<compile_context>
chip_gen: v7x
topology: tpu7x:2x2x1
jax: 0.10.0
libtpu: 0.0.40
codegen_flags: <defaults>
</compile_context>

<pallas_src>
import functools

import jax
import jax.numpy as jnp
from jax import lax
from jax.experimental import pallas as pl
from jax.experimental.pallas import tpu as pltpu


def _mine_kernel(x_ref, y_ref,
                 w1x_ref, b1x_ref, g1x_ref, be1x_ref,
                 w1y_ref, b1y_ref, g1y_ref, be1y_ref,
                 w2_ref, b2_ref, g2_ref, be2_ref,
                 w3_ref, b3_ref, *rest, apply_dropout, h1):
    if apply_dropout:
        mx_ref, my_ref, o_ref = rest
    else:
        (o_ref,) = rest

    f32 = jnp.float32

    def linear(a, w, b_ref):
        # torch nn.Linear: a @ W^T + b with W stored [out, in].  Contract the
        # lane (feature) axes of both operands -> no transpose materialized.
        # Operands stay in the weight's storage dtype; accumulate in f32.
        return lax.dot_general(a.astype(w.dtype), w,
                               (((1,), (1,)), ((), ())),
                               preferred_element_type=f32) + b_ref[...].astype(f32)

    def batchnorm(a, g_ref, be_ref, eps=1e-5):
        # Training-mode BatchNorm1d: biased batch stats, single pass (f32),
        # fused affine apply (one mul + one add per element).
        mean = jnp.mean(a, axis=0, keepdims=True)
        var = jnp.mean(a * a, axis=0, keepdims=True) - mean * mean
        scale = g_ref[...].astype(f32) * lax.rsqrt(var + eps)
        shift = be_ref[...].astype(f32) - mean * scale
        return a * scale + shift

    def elu(a):
        # TODO(synk): use jnp.expm1 once its Mosaic lowering is guaranteed;
        # exp(a)-1 is within tolerance for this module.
        return jnp.where(a > 0, a, jnp.exp(a) - 1.0)

    hx = batchnorm(linear(x_ref[...], w1x_ref[...], b1x_ref), g1x_ref, be1x_ref)
    hy = batchnorm(linear(y_ref[...], w1y_ref[...], b1y_ref), g1y_ref, be1y_ref)

    if apply_dropout:
        # Mask already holds {0, 2} = keep/drop scaled by 1/(1-p), p = 0.5.
        hx = hx * mx_ref[...].astype(f32)
        hy = hy * my_ref[...].astype(f32)

    ex = elu(hx)
    ey = elu(hy)

    # fc2 on the (never materialized) concat: split w2 with free static slices
    # inside the kernel and apply two partial matmuls.
    w2 = w2_ref[...]
    w2a = w2[:, :h1]
    w2b = w2[:, h1:]
    h = (lax.dot_general(ex.astype(w2.dtype), w2a, (((1,), (1,)), ((), ())),
                         preferred_element_type=f32)
         + lax.dot_general(ey.astype(w2.dtype), w2b, (((1,), (1,)), ((), ())),
                           preferred_element_type=f32)
         + b2_ref[...].astype(f32))
    h = elu(batchnorm(h, g2_ref, be2_ref))

    # fc3 (output width 1): VPU broadcast-multiply + lane reduction instead of
    # a 1-wide MXU matmul.
    out = (jnp.sum(h * w3_ref[...].astype(f32), axis=-1, keepdims=True)
           + b3_ref[...].astype(f32))
    o_ref[...] = out.astype(o_ref.dtype)


def make_dropout_mask(rng, batch, width, dtype):
    """F.dropout default: p = 0.5 -> keep w.p. 0.5, scale kept units by 2."""
    keep = jax.random.bernoulli(rng, 0.5, (batch, width))
    return jnp.where(keep, 2.0, 0.0).astype(dtype)


def mine_forward(x, y, params, *, training=True, rng=None):
    """x: [B, nx1], y: [B, nx2] -> [B, 1].  training=True applies p=0.5 dropout."""
    B = x.shape[0]
    h1 = params["w1x"].shape[0]
    h2 = params["w1y"].shape[0]

    def row(v):  # 1-D parameter -> (1, n): a lane-major row vector
        return v.reshape(1, -1)

    args = [
        x, y,
        params["w1x"], row(params["b1x"]), row(params["g1x"]), row(params["be1x"]),
        params["w1y"], row(params["b1y"]), row(params["g1y"]), row(params["be1y"]),
        params["w2"], row(params["b2"]), row(params["g2"]), row(params["be2"]),
        params["w3"].reshape(1, -1), row(params["b3"]),
    ]

    if training:
        if rng is None:
            rng = jax.random.PRNGKey(0)
        mask = make_dropout_mask(rng, B, h1 + h2, x.dtype)
        args += [mask[:, :h1], mask[:, h1:]]

    vmem = pl.BlockSpec(memory_space=pltpu.MemorySpace.VMEM)
    in_specs = [vmem] * len(args)

    # Explicit VMEM budget (inputs + output + headroom for intermediates).
    nbytes = sum(int(a.size) * a.dtype.itemsize for a in args) + B * 4
    vmem_limit = int(min(max(8 * nbytes, 4 * (1 << 20)), 48 * (1 << 20)))

    return pl.pallas_call(
        functools.partial(_mine_kernel, apply_dropout=bool(training), h1=h1),
        out_shape=jax.ShapeDtypeStruct((B, 1), x.dtype),
        in_specs=in_specs,
        out_specs=vmem,
        compiler_params=pltpu.CompilerParams(vmem_limit_bytes=vmem_limit),
    )(*args)


def init_params(key, nx1, nx2, dtype=jnp.float32):
    """Parameters mirroring the torch module (Linear U(-1/sqrt(in), 1/sqrt(in));
    BatchNorm gamma=1, beta=0)."""
    h1, h2 = nx1 // 16, nx2 // 16
    H = h1 + h2
    ks = jax.random.split(key, 4)

    def lin(k, out_f, in_f):
        lim = 1.0 / (in_f ** 0.5)
        kw, kb = jax.random.split(k)
        w = jax.random.uniform(kw, (out_f, in_f), dtype, -lim, lim)
        b = jax.random.uniform(kb, (out_f,), dtype, -lim, lim)
        return w, b

    w1x, b1x = lin(ks[0], h1, nx1)
    w1y, b1y = lin(ks[1], h2, nx2)
    w2, b2 = lin(ks[2], H, H)
    w3, b3 = lin(ks[3], 1, H)
    return dict(
        w1x=w1x, b1x=b1x, g1x=jnp.ones((h1,), dtype), be1x=jnp.zeros((h1,), dtype),
        w1y=w1y, b1y=b1y, g1y=jnp.ones((h2,), dtype), be1y=jnp.zeros((h2,), dtype),
        w2=w2, b2=b2, g2=jnp.ones((H,), dtype), be2=jnp.zeros((H,), dtype),
        w3=w3, b3=b3,
    )


def _reference(x, y, params, dropout_mask=None, eps=1e-5):
    """Pure-JAX reference mirroring the torch forward (train-mode BN)."""
    P = lax.Precision.HIGHEST

    def linear(a, w, b):
        return jnp.dot(a, w.T, precision=P) + b

    def bn(a, g, be):
        m = jnp.mean(a, axis=0, keepdims=True)
        v = jnp.mean((a - m) ** 2, axis=0, keepdims=True)
        return (a - m) / jnp.sqrt(v + eps) * g + be

    def elu(a):
        return jnp.where(a > 0, a, jnp.expm1(a))

    hx = bn(linear(x, params["w1x"], params["b1x"]), params["g1x"], params["be1x"])
    hy = bn(linear(y, params["w1y"], params["b1y"]), params["g1y"], params["be1y"])
    h = jnp.concatenate([hx, hy], axis=-1)
    if dropout_mask is not None:
        h = h * dropout_mask
    h = elu(h)
    h = elu(bn(linear(h, params["w2"], params["b2"]), params["g2"], params["be2"]))
    return linear(h, params["w3"], params["b3"])


if __name__ == "__main__":
    nx1, nx2, B = 256, 128, 64          # small sizes, divisible by 16 as the module requires
    h1, h2 = nx1 // 16, nx2 // 16
    key = jax.random.PRNGKey(0)
    kx, ky, kp, kd = jax.random.split(key, 4)
    x = jax.random.normal(kx, (B, nx1), dtype=jnp.float32)
    y = jax.random.normal(ky, (B, nx2), dtype=jnp.float32)
    params = init_params(kp, nx1, nx2)

    # Tolerance note: kernel matmuls run in the operands' storage dtype on the
    # MXU (default precision), so allow for bf16-pass rounding vs the f32
    # HIGHEST-precision reference.
    TOL = dict(atol=2e-2, rtol=2e-2)

    # Training path (p=0.5 dropout) checked against the reference with the
    # identical mask.
    mask = make_dropout_mask(kd, B, h1 + h2, x.dtype)
    out_train = jax.block_until_ready(mine_forward(x, y, params, training=True, rng=kd))
    ref_train = jax.block_until_ready(_reference(x, y, params, dropout_mask=mask))
    assert out_train.shape == (B, 1)
    assert bool(jnp.all(jnp.isfinite(out_train)))
    assert jnp.allclose(out_train, ref_train, **TOL), float(
        jnp.max(jnp.abs(out_train - ref_train)))

    # Deterministic (dropout-off) path checked against the reference.
    out = jax.block_until_ready(mine_forward(x, y, params, training=False))
    ref = jax.block_until_ready(_reference(x, y, params))
    assert out.shape == (B, 1)
    assert jnp.allclose(out, ref, **TOL), float(jnp.max(jnp.abs(out - ref)))

    print("KERNEL_OK")
</pallas_src>

<mosaic_0001>
module attributes {stable_mosaic.version = 11 : i64} {
  func.func @_mine_kernel(%arg0: memref<64x256xf32, #tpu.memory_space<vmem>>, %arg1: memref<64x128xf32, #tpu.memory_space<vmem>>, %arg2: memref<16x256xf32, #tpu.memory_space<vmem>>, %arg3: memref<1x16xf32, #tpu.memory_space<vmem>>, %arg4: memref<1x16xf32, #tpu.memory_space<vmem>>, %arg5: memref<1x16xf32, #tpu.memory_space<vmem>>, %arg6: memref<8x128xf32, #tpu.memory_space<vmem>>, %arg7: memref<1x8xf32, #tpu.memory_space<vmem>>, %arg8: memref<1x8xf32, #tpu.memory_space<vmem>>, %arg9: memref<1x8xf32, #tpu.memory_space<vmem>>, %arg10: memref<24x24xf32, #tpu.memory_space<vmem>>, %arg11: memref<1x24xf32, #tpu.memory_space<vmem>>, %arg12: memref<1x24xf32, #tpu.memory_space<vmem>>, %arg13: memref<1x24xf32, #tpu.memory_space<vmem>>, %arg14: memref<1x24xf32, #tpu.memory_space<vmem>>, %arg15: memref<1x1xf32, #tpu.memory_space<vmem>>, %arg16: memref<64x16xf32, #tpu.memory_space<vmem>>, %arg17: memref<64x8xf32, #tpu.memory_space<vmem>>, %arg18: memref<64x1xf32, #tpu.memory_space<vmem>>) attributes {dimension_semantics = [], scalar_prefetch = 0 : i64, scratch_operands = 0 : i64, tpu.core_type = #tpu.core_type<tc>} {
    %c0 = arith.constant 0 : index
    %c0_0 = arith.constant 0 : index
    %0 = vector.load %arg0[%c0, %c0_0] : memref<64x256xf32, #tpu.memory_space<vmem>>, vector<64x256xf32>
    %c0_1 = arith.constant 0 : index
    %c0_2 = arith.constant 0 : index
    %1 = vector.load %arg2[%c0_1, %c0_2] : memref<16x256xf32, #tpu.memory_space<vmem>>, vector<16x256xf32>
    %cst = arith.constant dense<0.000000e+00> : vector<64x16xf32>
    %2 = tpu.matmul %0, %1, %cst {dimension_numbers = #tpu.dot_dimension_numbers<[1], [1], [0], [0], [0, 0, 1, 0], [], []>} : vector<64x256xf32>, vector<16x256xf32>, vector<64x16xf32> -> vector<64x16xf32>
    %c0_3 = arith.constant 0 : index
    %c0_4 = arith.constant 0 : index
    %3 = vector.load %arg3[%c0_3, %c0_4] : memref<1x16xf32, #tpu.memory_space<vmem>>, vector<1x16xf32>
    %4 = vector.broadcast %3 : vector<1x16xf32> to vector<64x16xf32>
    %5 = arith.addf %2, %4 : vector<64x16xf32>
    %cst_5 = arith.constant dense<0.000000e+00> : vector<16xf32>
    %6 = vector.multi_reduction <add>, %5, %cst_5 [0] : vector<64x16xf32> to vector<16xf32>
    %7 = vector.shape_cast %6 : vector<16xf32> to vector<1x16xf32>
    %cst_6 = arith.constant 6.400000e+01 : f32
    %8 = vector.broadcast %cst_6 : f32 to vector<1x16xf32>
    %9 = arith.divf %7, %8 : vector<1x16xf32>
    %10 = arith.mulf %5, %5 : vector<64x16xf32>
    %cst_7 = arith.constant dense<0.000000e+00> : vector<16xf32>
    %11 = vector.multi_reduction <add>, %10, %cst_7 [0] : vector<64x16xf32> to vector<16xf32>
    %12 = vector.shape_cast %11 : vector<16xf32> to vector<1x16xf32>
    %cst_8 = arith.constant 6.400000e+01 : f32
    %13 = vector.broadcast %cst_8 : f32 to vector<1x16xf32>
    %14 = arith.divf %12, %13 : vector<1x16xf32>
    %15 = arith.mulf %9, %9 : vector<1x16xf32>
    %16 = arith.subf %14, %15 : vector<1x16xf32>
    %c0_9 = arith.constant 0 : index
    %c0_10 = arith.constant 0 : index
    %17 = vector.load %arg4[%c0_9, %c0_10] : memref<1x16xf32, #tpu.memory_space<vmem>>, vector<1x16xf32>
    %cst_11 = arith.constant 9.99999974E-6 : f32
    %18 = vector.broadcast %cst_11 : f32 to vector<1x16xf32>
    %19 = arith.addf %16, %18 : vector<1x16xf32>
    %20 = math.rsqrt %19 : vector<1x16xf32>
    %21 = arith.mulf %17, %20 : vector<1x16xf32>
    %c0_12 = arith.constant 0 : index
    %c0_13 = arith.constant 0 : index
    %22 = vector.load %arg5[%c0_12, %c0_13] : memref<1x16xf32, #tpu.memory_space<vmem>>, vector<1x16xf32>
    %23 = arith.mulf %9, %21 : vector<1x16xf32>
    %24 = arith.subf %22, %23 : vector<1x16xf32>
    %25 = vector.broadcast %21 : vector<1x16xf32> to vector<64x16xf32>
    %26 = arith.mulf %5, %25 : vector<64x16xf32>
    %27 = vector.broadcast %24 : vector<1x16xf32> to vector<64x16xf32>
    %28 = arith.addf %26, %27 : vector<64x16xf32>
    %c0_14 = arith.constant 0 : index
    %c0_15 = arith.constant 0 : index
    %29 = vector.load %arg1[%c0_14, %c0_15] : memref<64x128xf32, #tpu.memory_space<vmem>>, vector<64x128xf32>
    %c0_16 = arith.constant 0 : index
    %c0_17 = arith.constant 0 : index
    %30 = vector.load %arg6[%c0_16, %c0_17] : memref<8x128xf32, #tpu.memory_space<vmem>>, vector<8x128xf32>
    %cst_18 = arith.constant dense<0.000000e+00> : vector<64x8xf32>
    %31 = tpu.matmul %29, %30, %cst_18 {dimension_numbers = #tpu.dot_dimension_numbers<[1], [1], [0], [0], [0, 0, 1, 0], [], []>} : vector<64x128xf32>, vector<8x128xf32>, vector<64x8xf32> -> vector<64x8xf32>
    %c0_19 = arith.constant 0 : index
    %c0_20 = arith.constant 0 : index
    %32 = vector.load %arg7[%c0_19, %c0_20] : memref<1x8xf32, #tpu.memory_space<vmem>>, vector<1x8xf32>
    %33 = vector.broadcast %32 : vector<1x8xf32> to vector<64x8xf32>
    %34 = arith.addf %31, %33 : vector<64x8xf32>
    %cst_21 = arith.constant dense<0.000000e+00> : vector<8xf32>
    %35 = vector.multi_reduction <add>, %34, %cst_21 [0] : vector<64x8xf32> to vector<8xf32>
    %36 = vector.shape_cast %35 : vector<8xf32> to vector<1x8xf32>
    %cst_22 = arith.constant 6.400000e+01 : f32
    %37 = vector.broadcast %cst_22 : f32 to vector<1x8xf32>
    %38 = arith.divf %36, %37 : vector<1x8xf32>
    %39 = arith.mulf %34, %34 : vector<64x8xf32>
    %cst_23 = arith.constant dense<0.000000e+00> : vector<8xf32>
    %40 = vector.multi_reduction <add>, %39, %cst_23 [0] : vector<64x8xf32> to vector<8xf32>
    %41 = vector.shape_cast %40 : vector<8xf32> to vector<1x8xf32>
    %cst_24 = arith.constant 6.400000e+01 : f32
    %42 = vector.broadcast %cst_24 : f32 to vector<1x8xf32>
    %43 = arith.divf %41, %42 : vector<1x8xf32>
    %44 = arith.mulf %38, %38 : vector<1x8xf32>
    %45 = arith.subf %43, %44 : vector<1x8xf32>
    %c0_25 = arith.constant 0 : index
    %c0_26 = arith.constant 0 : index
    %46 = vector.load %arg8[%c0_25, %c0_26] : memref<1x8xf32, #tpu.memory_space<vmem>>, vector<1x8xf32>
    %cst_27 = arith.constant 9.99999974E-6 : f32
    %47 = vector.broadcast %cst_27 : f32 to vector<1x8xf32>
    %48 = arith.addf %45, %47 : vector<1x8xf32>
    %49 = math.rsqrt %48 : vector<1x8xf32>
    %50 = arith.mulf %46, %49 : vector<1x8xf32>
    %c0_28 = arith.constant 0 : index
    %c0_29 = arith.constant 0 : index
    %51 = vector.load %arg9[%c0_28, %c0_29] : memref<1x8xf32, #tpu.memory_space<vmem>>, vector<1x8xf32>
    %52 = arith.mulf %38, %50 : vector<1x8xf32>
    %53 = arith.subf %51, %52 : vector<1x8xf32>
    %54 = vector.broadcast %50 : vector<1x8xf32> to vector<64x8xf32>
    %55 = arith.mulf %34, %54 : vector<64x8xf32>
    %56 = vector.broadcast %53 : vector<1x8xf32> to vector<64x8xf32>
    %57 = arith.addf %55, %56 : vector<64x8xf32>
    %c0_30 = arith.constant 0 : index
    %c0_31 = arith.constant 0 : index
    %58 = vector.load %arg16[%c0_30, %c0_31] : memref<64x16xf32, #tpu.memory_space<vmem>>, vector<64x16xf32>
    %59 = arith.mulf %28, %58 : vector<64x16xf32>
    %c0_32 = arith.constant 0 : index
    %c0_33 = arith.constant 0 : index
    %60 = vector.load %arg17[%c0_32, %c0_33] : memref<64x8xf32, #tpu.memory_space<vmem>>, vector<64x8xf32>
    %61 = arith.mulf %57, %60 : vector<64x8xf32>
    %cst_34 = arith.constant 0.000000e+00 : f32
    %62 = vector.broadcast %cst_34 : f32 to vector<64x16xf32>
    %63 = arith.cmpf ogt, %59, %62 : vector<64x16xf32>
    %64 = math.exp %59 : vector<64x16xf32>
    %cst_35 = arith.constant 1.000000e+00 : f32
    %65 = vector.broadcast %cst_35 : f32 to vector<64x16xf32>
    %66 = arith.subf %64, %65 : vector<64x16xf32>
    %67 = arith.select %63, %59, %66 : vector<64x16xi1>, vector<64x16xf32>
    %cst_36 = arith.constant 0.000000e+00 : f32
    %68 = vector.broadcast %cst_36 : f32 to vector<64x8xf32>
    %69 = arith.cmpf ogt, %61, %68 : vector<64x8xf32>
    %70 = math.exp %61 : vector<64x8xf32>
    %cst_37 = arith.constant 1.000000e+00 : f32
    %71 = vector.broadcast %cst_37 : f32 to vector<64x8xf32>
    %72 = arith.subf %70, %71 : vector<64x8xf32>
    %73 = arith.select %69, %61, %72 : vector<64x8xi1>, vector<64x8xf32>
    %c0_38 = arith.constant 0 : index
    %c0_39 = arith.constant 0 : index
    %74 = vector.load %arg10[%c0_38, %c0_39] : memref<24x24xf32, #tpu.memory_space<vmem>>, vector<24x24xf32>
    %75 = vector.extract_strided_slice %74 {offsets = [0, 0], sizes = [24, 16], strides = [1, 1]} : vector<24x24xf32> to vector<24x16xf32>
    %76 = vector.extract_strided_slice %74 {offsets = [0, 16], sizes = [24, 8], strides = [1, 1]} : vector<24x24xf32> to vector<24x8xf32>
    %cst_40 = arith.constant dense<0.000000e+00> : vector<64x24xf32>
    %77 = tpu.matmul %67, %75, %cst_40 {dimension_numbers = #tpu.dot_dimension_numbers<[1], [1], [0], [0], [0, 0, 1, 0], [], []>} : vector<64x16xf32>, vector<24x16xf32>, vector<64x24xf32> -> vector<64x24xf32>
    %cst_41 = arith.constant dense<0.000000e+00> : vector<64x24xf32>
    %78 = tpu.matmul %73, %76, %cst_41 {dimension_numbers = #tpu.dot_dimension_numbers<[1], [1], [0], [0], [0, 0, 1, 0], [], []>} : vector<64x8xf32>, vector<24x8xf32>, vector<64x24xf32> -> vector<64x24xf32>
    %79 = arith.addf %77, %78 : vector<64x24xf32>
    %c0_42 = arith.constant 0 : index
    %c0_43 = arith.constant 0 : index
    %80 = vector.load %arg11[%c0_42, %c0_43] : memref<1x24xf32, #tpu.memory_space<vmem>>, vector<1x24xf32>
    %81 = vector.broadcast %80 : vector<1x24xf32> to vector<64x24xf32>
    %82 = arith.addf %79, %81 : vector<64x24xf32>
    %cst_44 = arith.constant dense<0.000000e+00> : vector<24xf32>
    %83 = vector.multi_reduction <add>, %82, %cst_44 [0] : vector<64x24xf32> to vector<24xf32>
    %84 = vector.shape_cast %83 : vector<24xf32> to vector<1x24xf32>
    %cst_45 = arith.constant 6.400000e+01 : f32
    %85 = vector.broadcast %cst_45 : f32 to vector<1x24xf32>
    %86 = arith.divf %84, %85 : vector<1x24xf32>
    %87 = arith.mulf %82, %82 : vector<64x24xf32>
    %cst_46 = arith.constant dense<0.000000e+00> : vector<24xf32>
    %88 = vector.multi_reduction <add>, %87, %cst_46 [0] : vector<64x24xf32> to vector<24xf32>
    %89 = vector.shape_cast %88 : vector<24xf32> to vector<1x24xf32>
    %cst_47 = arith.constant 6.400000e+01 : f32
    %90 = vector.broadcast %cst_47 : f32 to vector<1x24xf32>
    %91 = arith.divf %89, %90 : vector<1x24xf32>
    %92 = arith.mulf %86, %86 : vector<1x24xf32>
    %93 = arith.subf %91, %92 : vector<1x24xf32>
    %c0_48 = arith.constant 0 : index
    %c0_49 = arith.constant 0 : index
    %94 = vector.load %arg12[%c0_48, %c0_49] : memref<1x24xf32, #tpu.memory_space<vmem>>, vector<1x24xf32>
    %cst_50 = arith.constant 9.99999974E-6 : f32
    %95 = vector.broadcast %cst_50 : f32 to vector<1x24xf32>
    %96 = arith.addf %93, %95 : vector<1x24xf32>
    %97 = math.rsqrt %96 : vector<1x24xf32>
    %98 = arith.mulf %94, %97 : vector<1x24xf32>
    %c0_51 = arith.constant 0 : index
    %c0_52 = arith.constant 0 : index
    %99 = vector.load %arg13[%c0_51, %c0_52] : memref<1x24xf32, #tpu.memory_space<vmem>>, vector<1x24xf32>
    %100 = arith.mulf %86, %98 : vector<1x24xf32>
    %101 = arith.subf %99, %100 : vector<1x24xf32>
    %102 = vector.broadcast %98 : vector<1x24xf32> to vector<64x24xf32>
    %103 = arith.mulf %82, %102 : vector<64x24xf32>
    %104 = vector.broadcast %101 : vector<1x24xf32> to vector<64x24xf32>
    %105 = arith.addf %103, %104 : vector<64x24xf32>
    %cst_53 = arith.constant 0.000000e+00 : f32
    %106 = vector.broadcast %cst_53 : f32 to vector<64x24xf32>
    %107 = arith.cmpf ogt, %105, %106 : vector<64x24xf32>
    %108 = math.exp %105 : vector<64x24xf32>
    %cst_54 = arith.constant 1.000000e+00 : f32
    %109 = vector.broadcast %cst_54 : f32 to vector<64x24xf32>
    %110 = arith.subf %108, %109 : vector<64x24xf32>
    %111 = arith.select %107, %105, %110 : vector<64x24xi1>, vector<64x24xf32>
    %c0_55 = arith.constant 0 : index
    %c0_56 = arith.constant 0 : index
    %112 = vector.load %arg14[%c0_55, %c0_56] : memref<1x24xf32, #tpu.memory_space<vmem>>, vector<1x24xf32>
    %113 = vector.broadcast %112 : vector<1x24xf32> to vector<64x24xf32>
    %114 = arith.mulf %111, %113 : vector<64x24xf32>
    %cst_57 = arith.constant dense<0.000000e+00> : vector<64xf32>
    %115 = vector.multi_reduction <add>, %114, %cst_57 [1] : vector<64x24xf32> to vector<64xf32>
    %116 = vector.shape_cast %115 : vector<64xf32> to vector<64x1xf32>
    %c0_58 = arith.constant 0 : index
    %c0_59 = arith.constant 0 : index
    %117 = vector.load %arg15[%c0_58, %c0_59] : memref<1x1xf32, #tpu.memory_space<vmem>>, vector<1x1xf32>
    %118 = vector.broadcast %117 : vector<1x1xf32> to vector<64x1xf32>
    %119 = arith.addf %116, %118 : vector<64x1xf32>
    %c0_60 = arith.constant 0 : index
    %c0_61 = arith.constant 0 : index
    %120 = vector.load %arg18[%c0_60, %c0_61] : memref<64x1xf32, #tpu.memory_space<vmem>>, vector<64x1xf32>
    tpu.vector_store %arg18[%c0_60, %c0_61], %119 {strides = array<i32>} : memref<64x1xf32, #tpu.memory_space<vmem>>, vector<64x1xf32>,
    return
  }
}

</mosaic_0001>

<llo_original>
// kernel: tpu_custom_call.1
$region0: #{tpu_custom_call.1}
  #allocation0 [shape = 'u32[]', space=smem, size = 0x4, offset = 0x4, fixed_abs, tag = 'smem constant byte address 0x4 - core index']
  #allocation1 [shape = 'u32[144,128]{1,0:T(1,128)}', space=vmem, size = 0x12000, scoped, tag = 'internal scratch']
  #allocation2 [shape = 'f32[1,1]{1,0:T(1,128)S(1)}', space=vmem, size = 0x200, scoped, tag = 'scoped memory for tpu_custom_call.1']
  %s0 = inlined_call_operand.vmem [shape: f32[64,256], index: 0, kind: input, shape index: {}]
  %s1 = inlined_call_operand.hbm [shape: f32[64,128], index: 1, kind: input, shape index: {}]
  %s2 = inlined_call_operand.vmem [shape: f32[16,256], index: 2, kind: input, shape index: {}]
  %s3 = inlined_call_operand.hbm [shape: f32[1,16], index: 3, kind: input, shape index: {}]
  %s4 = inlined_call_operand.hbm [shape: f32[1,16], index: 4, kind: input, shape index: {}]
  %s5 = inlined_call_operand.hbm [shape: f32[1,16], index: 5, kind: input, shape index: {}]
  %s6 = inlined_call_operand.hbm [shape: f32[8,128], index: 6, kind: input, shape index: {}]
  %s7 = inlined_call_operand.hbm [shape: f32[1,8], index: 7, kind: input, shape index: {}]
  %s8 = inlined_call_operand.hbm [shape: f32[1,8], index: 8, kind: input, shape index: {}]
  %s9 = inlined_call_operand.hbm [shape: f32[1,8], index: 9, kind: input, shape index: {}]
  %s10 = inlined_call_operand.vmem [shape: f32[24,24], index: 10, kind: input, shape index: {}]
  %s11 = inlined_call_operand.hbm [shape: f32[1,24], index: 11, kind: input, shape index: {}]
  %s12 = inlined_call_operand.hbm [shape: f32[1,24], index: 12, kind: input, shape index: {}]
  %s13 = inlined_call_operand.hbm [shape: f32[1,24], index: 13, kind: input, shape index: {}]
  %s14 = inlined_call_operand.hbm [shape: f32[1,24], index: 14, kind: input, shape index: {}]
  %s15 = inlined_call_operand.<no memory space> [shape: f32[1,1], index: 15, kind: input, shape index: {}]
  %s16 = inlined_call_operand.vmem [shape: f32[64,16], index: 16, kind: input, shape index: {}]
  %s17 = inlined_call_operand.vmem [shape: f32[64,8], index: 17, kind: input, shape index: {}]
  %s18 = inlined_call_operand.vmem [shape: f32[64,1], index: 18, kind: output, shape index: {}]
  %s19 = sld [smem:[#allocation0]]
  $region130: #{tpu_custom_call.1} parent=0
    _
  %s21 = ssub.s32 1, %s19
  %s22 = scalar_select 0, %s21, %s19
  %v23 = vstv %s15
  %24 = vst [vmem:[#allocation2] sm:$0x1] %v23
  $region1: #{tpu_custom_call.1} parent=0
    #allocation3 [shape = 'u8[32768]{0}', space=vmem, size = 0x8000, scoped, tag = 'input window, operand 1, single buffered']
    #allocation4 [shape = 's32[1]{0}', space=sflag, size = 0x4, scoped, tag = 'scoped memory for tpu_custom_call.1']
    #allocation5 [shape = 'u8[512]{0}', space=vmem, size = 0x400, scoped, tag = 'input window, operand 3, single buffered']
    #allocation6 [shape = 's32[1]{0}', space=sflag, size = 0x4, scoped, tag = 'scoped memory for tpu_custom_call.1']
    #allocation7 [shape = 'u8[512]{0}', space=vmem, size = 0x400, scoped, tag = 'input window, operand 4, single buffered']
    #allocation8 [shape = 'u8[512]{0}', space=vmem, size = 0x400, scoped, tag = 'input window, operand 5, single buffered']
    #allocation9 [shape = 's32[1]{0}', space=sflag, size = 0x4, scoped, tag = 'scoped memory for tpu_custom_call.1']
    #allocation10 [shape = 'u8[4096]{0}', space=vmem, size = 0x1000, scoped, tag = 'input window, operand 6, single buffered']
    #allocation11 [shape = 'u8[512]{0}', space=vmem, size = 0x400, scoped, tag = 'input window, operand 7, single buffered']
    #allocation12 [shape = 's32[1]{0}', space=sflag, size = 0x4, scoped, tag = 'scoped memory for tpu_custom_call.1']
    #allocation13 [shape = 'u8[512]{0}', space=vmem, size = 0x400, scoped, tag = 'input window, operand 8, single buffered']
    #allocation14 [shape = 'u8[512]{0}', space=vmem, size = 0x400, scoped, tag = 'input window, operand 9, single buffered']
    #allocation15 [shape = 's32[1]{0}', space=sflag, size = 0x4, scoped, tag = 'scoped memory for tpu_custom_call.1']
    #allocation16 [shape = 'u8[512]{0}', space=vmem, size = 0x400, scoped, tag = 'input window, operand 11, single buffered']
    #allocation17 [shape = 'u8[512]{0}', space=vmem, size = 0x400, scoped, tag = 'input window, operand 12, single buffered']
    #allocation18 [shape = 's32[1]{0}', space=sflag, size = 0x4, scoped, tag = 'scoped memory for tpu_custom_call.1']
    #allocation19 [shape = 'u8[512]{0}', space=vmem, size = 0x400, scoped, tag = 'input window, operand 13, single buffered']
    #allocation20 [shape = 'u8[512]{0}', space=vmem, size = 0x400, scoped, tag = 'input window, operand 14, single buffered']
    #allocation21 [shape = 's32[1]{0}', space=sflag, size = 0x4, scoped, tag = 'scoped memory for tpu_custom_call.1']
    %25 = vsyncpa [#allocation4], 0
    %26 = vsyncpa [#allocation6], 0
    %27 = vsyncpa [#allocation9], 0
    %28 = vsyncpa [#allocation12], 0
    %29 = vsyncpa [#allocation15], 0
    %30 = vsyncpa [#allocation18], 0
    %31 = vsyncpa [#allocation21], 0
    // Predicated region
    $region2: #{tpu_custom_call.1} parent=1 // pred_check
      _
    $region3: #{tpu_custom_call.1} parent=1 // pred_check_branch
      %33 = sbr.rel (0) target = $region5
    $region4: #{tpu_custom_call.1} parent=1 // pred_region
      _
    $region5: #{tpu_custom_call.1} parent=1 // pred_fallthru
      _
    // Predicated region
    $region6: #{tpu_custom_call.1} parent=1 // pred_check
      _
    $region7: #{tpu_custom_call.1} parent=1 // pred_check_branch
      %35 = sbr.rel (0) target = $region9
    $region8: #{tpu_custom_call.1} parent=1 // pred_region
      %s37 = ssub.s32 1024, 1024
      %38 = vsyncadd [#allocation4], %s37
      %s39 = sshll.u32 [#allocation3], 4
      %s40 = int_to_ptr.vmem [resolvable:$true] %s39
      %45 = dma.hbm_to_vmem [thread:$0]  %s1, 1024, %s40, [#allocation4], 128, 128, 8
    $region9: #{tpu_custom_call.1} parent=1 // pred_fallthru
      _
    // Predicated region
    $region10: #{tpu_custom_call.1} parent=1 // pred_check
      _
    $region11: #{tpu_custom_call.1} parent=1 // pred_check_branch
      %47 = sbr.rel (0) target = $region13
    $region12: #{tpu_custom_call.1} parent=1 // pred_region
      _
    $region13: #{tpu_custom_call.1} parent=1 // pred_fallthru
      _
    // Predicated region
    $region14: #{tpu_custom_call.1} parent=1 // pred_check
      _
    $region15: #{tpu_custom_call.1} parent=1 // pred_check_branch
      %49 = sbr.rel (0) target = $region17
    $region16: #{tpu_custom_call.1} parent=1 // pred_region
      %s51 = ssub.s32 16, 16
      %52 = vsyncadd [#allocation6], %s51
      %s54 = sshll.u32 [#allocation5], 4
      %s55 = int_to_ptr.vmem [resolvable:$true] %s54
      %57 = dma.hbm_to_vmem [thread:$0]  %s3, 16, %s55, [#allocation6]
    $region17: #{tpu_custom_call.1} parent=1 // pred_fallthru
      _
    // Predicated region
    $region18: #{tpu_custom_call.1} parent=1 // pred_check
      _
    $region19: #{tpu_custom_call.1} parent=1 // pred_check_branch
      %59 = sbr.rel (0) target = $region21
    $region20: #{tpu_custom_call.1} parent=1 // pred_region
      %s61 = ssub.s32 16, 16
      %62 = vsyncadd [#allocation6], %s61
      %s64 = sshll.u32 [#allocation7], 4
      %s65 = int_to_ptr.vmem [resolvable:$true] %s64
      %67 = dma.hbm_to_vmem [thread:$0]  %s4, 16, %s65, [#allocation6]
    $region21: #{tpu_custom_call.1} parent=1 // pred_fallthru
      _
    // Predicated region
    $region22: #{tpu_custom_call.1} parent=1 // pred_check
      _
    $region23: #{tpu_custom_call.1} parent=1 // pred_check_branch
      %69 = sbr.rel (0) target = $region25
    $region24: #{tpu_custom_call.1} parent=1 // pred_region
      %s71 = ssub.s32 16, 16
      %72 = vsyncadd [#allocation9], %s71
      %s74 = sshll.u32 [#allocation8], 4
      %s75 = int_to_ptr.vmem [resolvable:$true] %s74
      %77 = dma.hbm_to_vmem [thread:$0]  %s5, 16, %s75, [#allocation9]
    $region25: #{tpu_custom_call.1} parent=1 // pred_fallthru
      _
    // Predicated region
    $region26: #{tpu_custom_call.1} parent=1 // pred_check
      _
    $region27: #{tpu_custom_call.1} parent=1 // pred_check_branch
      %79 = sbr.rel (0) target = $region29
    $region28: #{tpu_custom_call.1} parent=1 // pred_region
      %s81 = ssub.s32 128, 128
      %82 = vsyncadd [#allocation9], %s81
      %s84 = sshll.u32 [#allocation10], 4
      %s85 = int_to_ptr.vmem [resolvable:$true] %s84
      %87 = dma.hbm_to_vmem [thread:$0]  %s6, 128, %s85, [#allocation9]
    $region29: #{tpu_custom_call.1} parent=1 // pred_fallthru
      _
    // Predicated region
    $region30: #{tpu_custom_call.1} parent=1 // pred_check
      _
    $region31: #{tpu_custom_call.1} parent=1 // pred_check_branch
      %89 = sbr.rel (0) target = $region33
    $region32: #{tpu_custom_call.1} parent=1 // pred_region
      %s91 = ssub.s32 16, 16
      %92 = vsyncadd [#allocation12], %s91
      %s94 = sshll.u32 [#allocation11], 4
      %s95 = int_to_ptr.vmem [resolvable:$true] %s94
      %97 = dma.hbm_to_vmem [thread:$0]  %s7, 16, %s95, [#allocation12]
    $region33: #{tpu_custom_call.1} parent=1 // pred_fallthru
      _
    // Predicated region
    $region34: #{tpu_custom_call.1} parent=1 // pred_check
      _
    $region35: #{tpu_custom_call.1} parent=1 // pred_check_branch
      %99 = sbr.rel (0) target = $region37
    $region36: #{tpu_custom_call.1} parent=1 // pred_region
      %s101 = ssub.s32 16, 16
      %102 = vsyncadd [#allocation12], %s101
      %s104 = sshll.u32 [#allocation13], 4
      %s105 = int_to_ptr.vmem [resolvable:$true] %s104
      %107 = dma.hbm_to_vmem [thread:$0]  %s8, 16, %s105, [#allocation12]
    $region37: #{tpu_custom_call.1} parent=1 // pred_fallthru
      _
    // Predicated region
    $region38: #{tpu_custom_call.1} parent=1 // pred_check
      _
    $region39: #{tpu_custom_call.1} parent=1 // pred_check_branch
      %109 = sbr.rel (0) target = $region41
    $region40: #{tpu_custom_call.1} parent=1 // pred_region
      %s111 = ssub.s32 16, 16
      %112 = vsyncadd [#allocation15], %s111
      %s114 = sshll.u32 [#allocation14], 4
      %s115 = int_to_ptr.vmem [resolvable:$true] %s114
      %117 = dma.hbm_to_vmem [thread:$0]  %s9, 16, %s115, [#allocation15]
    $region41: #{tpu_custom_call.1} parent=1 // pred_fallthru
      _
    // Predicated region
    $region42: #{tpu_custom_call.1} parent=1 // pred_check
      _
    $region43: #{tpu_custom_call.1} parent=1 // pred_check_branch
      %119 = sbr.rel (0) target = $region45
    $region44: #{tpu_custom_call.1} parent=1 // pred_region
      _
    $region45: #{tpu_custom_call.1} parent=1 // pred_fallthru
      _
    // Predicated region
    $region46: #{tpu_custom_call.1} parent=1 // pred_check
      _
    $region47: #{tpu_custom_call.1} parent=1 // pred_check_branch
      %121 = sbr.rel (0) target = $region49
    $region48: #{tpu_custom_call.1} parent=1 // pred_region
      %s123 = ssub.s32 16, 16
      %124 = vsyncadd [#allocation15], %s123
      %s126 = sshll.u32 [#allocation16], 4
      %s127 = int_to_ptr.vmem [resolvable:$true] %s126
      %129 = dma.hbm_to_vmem [thread:$0]  %s11, 16, %s127, [#allocation15]
    $region49: #{tpu_custom_call.1} parent=1 // pred_fallthru
      _
    // Predicated region
    $region50: #{tpu_custom_call.1} parent=1 // pred_check
      _
    $region51: #{tpu_custom_call.1} parent=1 // pred_check_branch
      %131 = sbr.rel (0) target = $region53
    $region52: #{tpu_custom_call.1} parent=1 // pred_region
      %s133 = ssub.s32 16, 16
      %134 = vsyncadd [#allocation18], %s133
      %s136 = sshll.u32 [#allocation17], 4
      %s137 = int_to_ptr.vmem [resolvable:$true] %s136
      %139 = dma.hbm_to_vmem [thread:$0]  %s12, 16, %s137, [#allocation18]
    $region53: #{tpu_custom_call.1} parent=1 // pred_fallthru
      _
    // Predicated region
    $region54: #{tpu_custom_call.1} parent=1 // pred_check
      _
    $region55: #{tpu_custom_call.1} parent=1 // pred_check_branch
      %141 = sbr.rel (0) target = $region57
    $region56: #{tpu_custom_call.1} parent=1 // pred_region
      %s143 = ssub.s32 16, 16
      %144 = vsyncadd [#allocation18], %s143
      %s146 = sshll.u32 [#allocation19], 4
      %s147 = int_to_ptr.vmem [resolvable:$true] %s146
      %149 = dma.hbm_to_vmem [thread:$0]  %s13, 16, %s147, [#allocation18]
    $region57: #{tpu_custom_call.1} parent=1 // pred_fallthru
      _
    // Predicated region
    $region58: #{tpu_custom_call.1} parent=1 // pred_check
      _
    $region59: #{tpu_custom_call.1} parent=1 // pred_check_branch
      %151 = sbr.rel (0) target = $region61
    $region60: #{tpu_custom_call.1} parent=1 // pred_region
      %s153 = ssub.s32 16, 16
      %154 = vsyncadd [#allocation21], %s153
      %s156 = sshll.u32 [#allocation20], 4
      %s157 = int_to_ptr.vmem [resolvable:$true] %s156
      %159 = dma.hbm_to_vmem [thread:$0]  %s14, 16, %s157, [#allocation21]
    $region61: #{tpu_custom_call.1} parent=1 // pred_fallthru
      _
    // Predicated region
    $region62: #{tpu_custom_call.1} parent=1 // pred_check
      _
    $region63: #{tpu_custom_call.1} parent=1 // pred_check_branch
      %161 = sbr.rel (0) target = $region65
    $region64: #{tpu_custom_call.1} parent=1 // pred_region
      _
    $region65: #{tpu_custom_call.1} parent=1 // pred_fallthru
      _
    // Predicated region
    $region66: #{tpu_custom_call.1} parent=1 // pred_check
      _
    $region67: #{tpu_custom_call.1} parent=1 // pred_check_branch
      %163 = sbr.rel (0) target = $region69
    $region68: #{tpu_custom_call.1} parent=1 // pred_region
      _
    $region69: #{tpu_custom_call.1} parent=1 // pred_fallthru
      _
    // Predicated region
    $region70: #{tpu_custom_call.1} parent=1 // pred_check
      _
    $region71: #{tpu_custom_call.1} parent=1 // pred_check_branch
      %165 = sbr.rel (0) target = $region73
    $region72: #{tpu_custom_call.1} parent=1 // pred_region
      _
    $region73: #{tpu_custom_call.1} parent=1 // pred_fallthru
      _
    // Predicated region
    $region74: #{tpu_custom_call.1} parent=1 // pred_check
      _
    $region75: #{tpu_custom_call.1} parent=1 // pred_check_branch
      %167 = sbr.rel (0) target = $region77
    $region76: #{tpu_custom_call.1} parent=1 // pred_region
      %168 = dma.done [#allocation4], 1024
    $region77: #{tpu_custom_call.1} parent=1 // pred_fallthru
      _
    // Predicated region
    $region78: #{tpu_custom_call.1} parent=1 // pred_check
      _
    $region79: #{tpu_custom_call.1} parent=1 // pred_check_branch
      %170 = sbr.rel (0) target = $region81
    $region80: #{tpu_custom_call.1} parent=1 // pred_region
      %171 = dma.done [#allocation6], 16
    $region81: #{tpu_custom_call.1} parent=1 // pred_fallthru
      _
    // Predicated region
    $region82: #{tpu_custom_call.1} parent=1 // pred_check
      _
    $region83: #{tpu_custom_call.1} parent=1 // pred_check_branch
      %173 = sbr.rel (0) target = $region85
    $region84: #{tpu_custom_call.1} parent=1 // pred_region
      %174 = dma.done [#allocation6], 16
    $region85: #{tpu_custom_call.1} parent=1 // pred_fallthru
      _
    // Predicated region
    $region86: #{tpu_custom_call.1} parent=1 // pred_check
      _
    $region87: #{tpu_custom_call.1} parent=1 // pred_check_branch
      %176 = sbr.rel (0) target = $region89
    $region88: #{tpu_custom_call.1} parent=1 // pred_region
      %177 = dma.done [#allocation9], 16
    $region89: #{tpu_custom_call.1} parent=1 // pred_fallthru
      _
    // Predicated region
    $region90: #{tpu_custom_call.1} parent=1 // pred_check
      _
    $region91: #{tpu_custom_call.1} parent=1 // pred_check_branch
      %179 = sbr.rel (0) target = $region93
    $region92: #{tpu_custom_call.1} parent=1 // pred_region
      %180 = dma.done [#allocation9], 128
    $region93: #{tpu_custom_call.1} parent=1 // pred_fallthru
      _
    // Predicated region
    $region94: #{tpu_custom_call.1} parent=1 // pred_check
      _
    $region95: #{tpu_custom_call.1} parent=1 // pred_check_branch
      %182 = sbr.rel (0) target = $region97
    $region96: #{tpu_custom_call.1} parent=1 // pred_region
      %183 = dma.done [#allocation12], 16
    $region97: #{tpu_custom_call.1} parent=1 // pred_fallthru
      _
    // Predicated region
    $region98: #{tpu_custom_call.1} parent=1 // pred_check
      _
    $region99: #{tpu_custom_call.1} parent=1 // pred_check_branch
      %185 = sbr.rel (0) target = $region101
    $region100: #{tpu_custom_call.1} parent=1 // pred_region
      %186 = dma.done [#allocation12], 16
    $region101: #{tpu_custom_call.1} parent=1 // pred_fallthru
      _
    // Predicated region
    $region102: #{tpu_custom_call.1} parent=1 // pred_check
      _
    $region103: #{tpu_custom_call.1} parent=1 // pred_check_branch
      %188 = sbr.rel (0) target = $region105
    $region104: #{tpu_custom_call.1} parent=1 // pred_region
      %189 = dma.done [#allocation15], 16
    $region105: #{tpu_custom_call.1} parent=1 // pred_fallthru
      _
    // Predicated region
    $region106: #{tpu_custom_call.1} parent=1 // pred_check
      _
    $region107: #{tpu_custom_call.1} parent=1 // pred_check_branch
      %191 = sbr.rel (0) target = $region109
    $region108: #{tpu_custom_call.1} parent=1 // pred_region
      %192 = dma.done [#allocation15], 16
    $region109: #{tpu_custom_call.1} parent=1 // pred_fallthru
      _
    // Predicated region
    $region110: #{tpu_custom_call.1} parent=1 // pred_check
      _
    $region111: #{tpu_custom_call.1} parent=1 // pred_check_branch
      %194 = sbr.rel (0) target = $region113
    $region112: #{tpu_custom_call.1} parent=1 // pred_region
      %195 = dma.done [#allocation18], 16
    $region113: #{tpu_custom_call.1} parent=1 // pred_fallthru
      _
    // Predicated region
    $region114: #{tpu_custom_call.1} parent=1 // pred_check
      _
    $region115: #{tpu_custom_call.1} parent=1 // pred_check_branch
      %197 = sbr.rel (0) target = $region117
    $region116: #{tpu_custom_call.1} parent=1 // pred_region
      %198 = dma.done [#allocation18], 16
    $region117: #{tpu_custom_call.1} parent=1 // pred_fallthru
      _
    // Predicated region
    $region118: #{tpu_custom_call.1} parent=1 // pred_check
      _
    $region119: #{tpu_custom_call.1} parent=1 // pred_check_branch
      %200 = sbr.rel (0) target = $region121
    $region120: #{tpu_custom_call.1} parent=1 // pred_region
      %201 = dma.done [#allocation21], 16
    $region121: #{tpu_custom_call.1} parent=1 // pred_fallthru
      _
    %v202 = vld [vmem:[%s0] sm:$0xff]
    %v203 = vld [vmem:[%s0 + $0x8] sm:$0xff]
    %v204 = vld [vmem:[%s0 + $0x10] sm:$0xff]
    %v205 = vld [vmem:[%s0 + $0x18] sm:$0xff]
    %v206 = vld [vmem:[%s0 + $0x20] sm:$0xff]
    %v207 = vld [vmem:[%s0 + $0x28] sm:$0xff]
    %v208 = vld [vmem:[%s0 + $0x30] sm:$0xff]
    %v209 = vld [vmem:[%s0 + $0x38] sm:$0xff]
    %v210 = vld [vmem:[%s0 + $0x40] sm:$0xff]
    %v211 = vld [vmem:[%s0 + $0x48] sm:$0xff]
    %v212 = vld [vmem:[%s0 + $0x50] sm:$0xff]
    %v213 = vld [vmem:[%s0 + $0x58] sm:$0xff]
    %v214 = vld [vmem:[%s0 + $0x60] sm:$0xff]
    %v215 = vld [vmem:[%s0 + $0x68] sm:$0xff]
    %v216 = vld [vmem:[%s0 + $0x70] sm:$0xff]
    %v217 = vld [vmem:[%s0 + $0x78] sm:$0xff]
    %v218 = vld [vmem:[%s2] sm:$0xff]
    %v219 = vld [vmem:[%s2 + $0x8] sm:$0xff]
    %v220 = vld [vmem:[%s2 + $0x10] sm:$0xff]
    %v221 = vld [vmem:[%s2 + $0x18] sm:$0xff]
    %v222 = vld [vmem:[#allocation5] sm:$0x1]
    %v224 = vlaneseq
    %v225 = vshrl.u32 %v224, 7
    %v226 = vsub.s32 0, %v225
    %v227 = vrot.slane %v222, %v226
    %229 = vmatprep.subr.mxu0 %v219
    %230 = vmatpush1.xpose.msra.mxu0 %v218
    %231 = vmatprep.subr.mxu0 %v221
    %232 = vmatpush1.xpose.msra.mxu0 %v220
    %233 = vmatprep.subr.mxu0 0.0
    %234 = vmatpush1.xpose.msra.mxu0 0.0
    %235 = vmatprep.subr.mxu0 0.0
    %236 = vmatpush1.xpose.msra.mxu0 0.0
    %237 = vmatprep.subr.mxu0 0.0
    %238 = vmatpush1.xpose.msra.mxu0 0.0
    %239 = vmatprep.subr.mxu0 0.0
    %240 = vmatpush1.xpose.msra.mxu0 0.0
    %241 = vmatprep.subr.mxu0 0.0
    %242 = vmatpush1.xpose.msra.mxu0 0.0
    %243 = vmatprep.subr.mxu0 0.0
    %244 = vmatpush1.xpose.msra.mxu0 0.0
    %245 = vmatprep.subr.mxu0 0.0
    %246 = vmatpush1.xpose.msra.mxu0 0.0
    %247 = vmatprep.subr.mxu0 0.0
    %248 = vmatpush1.xpose.msra.mxu0 0.0
    %249 = vmatprep.subr.mxu0 0.0
    %250 = vmatpush1.xpose.msra.mxu0 0.0
    %251 = vmatprep.subr.mxu0 0.0
    %252 = vmatpush1.xpose.msra.mxu0 0.0
    %253 = vmatprep.subr.mxu0 0.0
    %254 = vmatpush1.xpose.msra.mxu0 0.0
    %255 = vmatprep.subr.mxu0 0.0
    %256 = vmatpush1.xpose.msra.mxu0 0.0
    %257 = vmatprep.subr.mxu0 0.0
    %258 = vmatpush1.xpose.msra.mxu0 0.0
    %259 = vmatprep.subr.mxu0 0.0
    %260 = vmatpush1.xpose.msra.mxu0 0.0
    %261 = vmatprep.subr.mxu0 0.0
    %262 = vmatpush1.xpose.msra.mxu0 0.0
    %263 = vmatprep.subr.mxu0 0.0
    %264 = vmatpush1.xpose.msra.mxu0 0.0
    %265 = vmatprep.subr.mxu0 0.0
    %266 = vmatpush1.xpose.msra.mxu0 0.0
    %267 = vmatprep.subr.mxu0 0.0
    %268 = vmatpush1.xpose.msra.mxu0 0.0
    %269 = vmatprep.subr.mxu0 0.0
    %270 = vmatpush1.xpose.msra.mxu0 0.0
    %271 = vmatprep.subr.mxu0 0.0
    %272 = vmatpush1.xpose.msra.mxu0 0.0
    %273 = vmatprep.subr.mxu0 0.0
    %274 = vmatpush1.xpose.msra.mxu0 0.0
    %275 = vmatprep.subr.mxu0 0.0
    %276 = vmatpush1.xpose.msra.mxu0 0.0
    %277 = vmatprep.subr.mxu0 0.0
    %278 = vmatpush1.xpose.msra.mxu0 0.0
    %279 = vmatprep.subr.mxu0 0.0
    %280 = vmatpush1.xpose.msra.mxu0 0.0
    %281 = vmatprep.subr.mxu0 0.0
    %282 = vmatpush1.xpose.msra.mxu0 0.0
    %283 = vmatprep.subr.mxu0 0.0
    %284 = vmatpush1.xpose.msra.mxu0 0.0
    %285 = vmatprep.subr.mxu0 0.0
    %286 = vmatpush1.xpose.msra.mxu0 0.0
    %287 = vmatprep.subr.mxu0 0.0
    %288 = vmatpush1.xpose.msra.mxu0 0.0
    %289 = vmatprep.subr.mxu0 0.0
    %290 = vmatpush1.xpose.msra.mxu0 0.0
    %291 = vmatprep.subr.mxu0 0.0
    %292 = vmatpush1.xpose.msra.mxu0 0.0
    %293 = vmatprep.mubr.f32.mxu0 %v203
    %294 = vmatmul.mubr.f32.gmra.mrb[0].mxu0 %v202
    %v295 = vpop.f32.mrb[0].mxu0
    %v296 = vadd.f32 %v227, %v295
    %v297 = vpop.f32.mrb[0].mxu0
    %298 = vmatprep.mubr.f32.mxu0 %v205
    %299 = vmatmul.mubr.f32.gmra.mrb[0].mxu0 %v204
    %v300 = vpop.f32.mrb[0].mxu0
    %v301 = vadd.f32 %v227, %v300
    %v302 = vpop.f32.mrb[0].mxu0
    %303 = vmatprep.mubr.f32.mxu0 %v207
    %304 = vmatmul.mubr.f32.gmra.mrb[0].mxu0 %v206
    %v305 = vpop.f32.mrb[0].mxu0
    %v306 = vadd.f32 %v227, %v305
    %v307 = vpop.f32.mrb[0].mxu0
    %308 = vmatprep.mubr.f32.mxu0 %v209
    %309 = vmatmul.mubr.f32.gmra.mrb[0].mxu0 %v208
    %v310 = vpop.f32.mrb[0].mxu0
    %v311 = vadd.f32 %v227, %v310
    %v312 = vpop.f32.mrb[0].mxu0
    %313 = vmatprep.mubr.f32.mxu0 %v211
    %314 = vmatmul.mubr.f32.gmra.mrb[0].mxu0 %v210
    %v315 = vpop.f32.mrb[0].mxu0
    %v316 = vadd.f32 %v227, %v315
    %v317 = vpop.f32.mrb[0].mxu0
    %318 = vmatprep.mubr.f32.mxu0 %v213
    %319 = vmatmul.mubr.f32.gmra.mrb[0].mxu0 %v212
    %v320 = vpop.f32.mrb[0].mxu0
    %v321 = vadd.f32 %v227, %v320
    %v322 = vpop.f32.mrb[0].mxu0
    %323 = vmatprep.mubr.f32.mxu0 %v215
    %324 = vmatmul.mubr.f32.gmra.mrb[0].mxu0 %v214
    %v325 = vpop.f32.mrb[0].mxu0
    %v326 = vadd.f32 %v227, %v325
    %v327 = vpop.f32.mrb[0].mxu0
    %328 = vmatprep.mubr.f32.mxu0 %v217
    %329 = vmatmul.mubr.f32.gmra.mrb[0].mxu0 %v216
    %v330 = vpop.f32.mrb[0].mxu0
    %v331 = vadd.f32 %v227, %v330
    %v332 = vpop.f32.mrb[0].mxu0
    %333 = vdwg.mxu0
    %vm334 = vcmask 130048
    %v335 = vsel %vm334, %v296, 0.0
    %v336 = vsel %vm334, %v301, 0.0
    %v337 = vadd.f32 %v335, %v336
    %v338 = vsel %vm334, %v306, 0.0
    %v339 = vadd.f32 %v337, %v338
    %v340 = vsel %vm334, %v311, 0.0
    %v341 = vadd.f32 %v339, %v340
    %v342 = vsel %vm334, %v316, 0.0
    %v343 = vadd.f32 %v341, %v342
    %v344 = vsel %vm334, %v321, 0.0
    %v345 = vadd.f32 %v343, %v344
    %v346 = vsel %vm334, %v326, 0.0
    %v347 = vadd.f32 %v345, %v346
    %v348 = vsel %vm334, %v331, 0.0
    %v349 = vadd.f32 %v347, %v348
    %v350 = vrot.slane %v349, 4
    %v351 = vadd.f32 %v349, %v350
    %v352 = vrot.slane %v351, 2
    %v353 = vadd.f32 %v351, %v352
    %v354 = vrot.slane %v353, 1
    %v355 = vadd.f32 %v353, %v354
    %v356 = vrcp.pop 64.0
    %v357 = vmul.f32 %v355, %v356
    %v358 = vmul.f32 %v296, %v296
    %v359 = vmul.f32 %v301, %v301
    %v360 = vmul.f32 %v306, %v306
    %v361 = vmul.f32 %v311, %v311
    %v362 = vmul.f32 %v316, %v316
    %v363 = vmul.f32 %v321, %v321
    %v364 = vmul.f32 %v326, %v326
    %v365 = vmul.f32 %v331, %v331
    %v366 = vsel %vm334, %v358, 0.0
    %v367 = vsel %vm334, %v359, 0.0
    %v368 = vadd.f32 %v366, %v367
    %v369 = vsel %vm334, %v360, 0.0
    %v370 = vadd.f32 %v368, %v369
    %v371 = vsel %vm334, %v361, 0.0
    %v372 = vadd.f32 %v370, %v371
    %v373 = vsel %vm334, %v362, 0.0
    %v374 = vadd.f32 %v372, %v373
    %v375 = vsel %vm334, %v363, 0.0
    %v376 = vadd.f32 %v374, %v375
    %v377 = vsel %vm334, %v364, 0.0
    %v378 = vadd.f32 %v376, %v377
    %v379 = vsel %vm334, %v365, 0.0
    %v380 = vadd.f32 %v378, %v379
    %v381 = vrot.slane %v380, 4
    %v382 = vadd.f32 %v380, %v381
    %v383 = vrot.slane %v382, 2
    %v384 = vadd.f32 %v382, %v383
    %v385 = vrot.slane %v384, 1
    %v386 = vadd.f32 %v384, %v385
    %v387 = vmul.f32 %v386, %v356
    %v388 = vmul.f32 %v357, %v357
    %v389 = vsub.f32 %v387, %v388
    %v390 = vld [vmem:[#allocation7] sm:$0x1]
    %v391 = vadd.f32 %v389, 1e-05
    %v392 = vrsqrt.pop %v391
    %v393 = vmul.f32 %v390, %v392
    %v394 = vld [vmem:[#allocation8] sm:$0x1]
    %v395 = vmul.f32 %v357, %v393
    %v396 = vsub.f32 %v394, %v395
    %v398 = vlaneseq
    %v399 = vshrl.u32 %v398, 7
    %v400 = vsub.s32 0, %v399
    %v401 = vrot.slane %v393, %v400
    %v403 = vmul.f32 %v296, %v401
    %v404 = vmul.f32 %v301, %v401
    %v405 = vmul.f32 %v306, %v401
    %v406 = vmul.f32 %v311, %v401
    %v407 = vmul.f32 %v316, %v401
    %v408 = vmul.f32 %v321, %v401
    %v409 = vmul.f32 %v326, %v401
    %v410 = vmul.f32 %v331, %v401
    %v412 = vlaneseq
    %v413 = vshrl.u32 %v412, 7
    %v414 = vsub.s32 0, %v413
    %v415 = vrot.slane %v396, %v414
    %v417 = vadd.f32 %v403, %v415
    %v418 = vadd.f32 %v404, %v415
    %v419 = vadd.f32 %v405, %v415
    %v420 = vadd.f32 %v406, %v415
    %v421 = vadd.f32 %v407, %v415
    %v422 = vadd.f32 %v408, %v415
    %v423 = vadd.f32 %v409, %v415
    %v424 = vadd.f32 %v410, %v415
    %v425 = vld [vmem:[#allocation3] sm:$0xff]
    %v426 = vld [vmem:[#allocation3 + $0x8] sm:$0xff]
    %v427 = vld [vmem:[#allocation3 + $0x10] sm:$0xff]
    %v428 = vld [vmem:[#allocation3 + $0x18] sm:$0xff]
    %v429 = vld [vmem:[#allocation3 + $0x20] sm:$0xff]
    %v430 = vld [vmem:[#allocation3 + $0x28] sm:$0xff]
    %v431 = vld [vmem:[#allocation3 + $0x30] sm:$0xff]
    %v432 = vld [vmem:[#allocation3 + $0x38] sm:$0xff]
    %v433 = vld [vmem:[#allocation10] sm:$0xff]
    %v434 = vld [vmem:[#allocation11] sm:$0x1]
    %v436 = vlaneseq
    %v437 = vshrl.u32 %v436, 7
    %v438 = vsub.s32 0, %v437
    %v439 = vrot.slane %v434, %v438
    %441 = vmatprep.subr.mxu0 0.0
    %442 = vmatpush1.xpose.msra.mxu0 %v433
    %443 = vmatprep.subr.mxu0 0.0
    %444 = vmatpush1.xpose.msra.mxu0 0.0
    %445 = vmatprep.subr.mxu0 0.0
    %446 = vmatpush1.xpose.msra.mxu0 0.0
    %447 = vmatprep.subr.mxu0 0.0
    %448 = vmatpush1.xpose.msra.mxu0 0.0
    %449 = vmatprep.subr.mxu0 0.0
    %450 = vmatpush1.xpose.msra.mxu0 0.0
    %451 = vmatprep.subr.mxu0 0.0
    %452 = vmatpush1.xpose.msra.mxu0 0.0
    %453 = vmatprep.subr.mxu0 0.0
    %454 = vmatpush1.xpose.msra.mxu0 0.0
    %455 = vmatprep.subr.mxu0 0.0
    %456 = vmatpush1.xpose.msra.mxu0 0.0
    %457 = vmatprep.subr.mxu0 0.0
    %458 = vmatpush1.xpose.msra.mxu0 0.0
    %459 = vmatprep.subr.mxu0 0.0
    %460 = vmatpush1.xpose.msra.mxu0 0.0
    %461 = vmatprep.subr.mxu0 0.0
    %462 = vmatpush1.xpose.msra.mxu0 0.0
    %463 = vmatprep.subr.mxu0 0.0
    %464 = vmatpush1.xpose.msra.mxu0 0.0
    %465 = vmatprep.subr.mxu0 0.0
    %466 = vmatpush1.xpose.msra.mxu0 0.0
    %467 = vmatprep.subr.mxu0 0.0
    %468 = vmatpush1.xpose.msra.mxu0 0.0
    %469 = vmatprep.subr.mxu0 0.0
    %470 = vmatpush1.xpose.msra.mxu0 0.0
    %471 = vmatprep.subr.mxu0 0.0
    %472 = vmatpush1.xpose.msra.mxu0 0.0
    %473 = vmatprep.subr.mxu0 0.0
    %474 = vmatpush1.xpose.msra.mxu0 0.0
    %475 = vmatprep.subr.mxu0 0.0
    %476 = vmatpush1.xpose.msra.mxu0 0.0
    %477 = vmatprep.subr.mxu0 0.0
    %478 = vmatpush1.xpose.msra.mxu0 0.0
    %479 = vmatprep.subr.mxu0 0.0
    %480 = vmatpush1.xpose.msra.mxu0 0.0
    %481 = vmatprep.subr.mxu0 0.0
    %482 = vmatpush1.xpose.msra.mxu0 0.0
    %483 = vmatprep.subr.mxu0 0.0
    %484 = vmatpush1.xpose.msra.mxu0 0.0
    %485 = vmatprep.subr.mxu0 0.0
    %486 = vmatpush1.xpose.msra.mxu0 0.0
    %487 = vmatprep.subr.mxu0 0.0
    %488 = vmatpush1.xpose.msra.mxu0 0.0
    %489 = vmatprep.subr.mxu0 0.0
    %490 = vmatpush1.xpose.msra.mxu0 0.0
    %491 = vmatprep.subr.mxu0 0.0
    %492 = vmatpush1.xpose.msra.mxu0 0.0
    %493 = vmatprep.subr.mxu0 0.0
    %494 = vmatpush1.xpose.msra.mxu0 0.0
    %495 = vmatprep.subr.mxu0 0.0
    %496 = vmatpush1.xpose.msra.mxu0 0.0
    %497 = vmatprep.subr.mxu0 0.0
    %498 = vmatpush1.xpose.msra.mxu0 0.0
    %499 = vmatprep.subr.mxu0 0.0
    %500 = vmatpush1.xpose.msra.mxu0 0.0
    %501 = vmatprep.subr.mxu0 0.0
    %502 = vmatpush1.xpose.msra.mxu0 0.0
    %503 = vmatprep.subr.mxu0 0.0
    %504 = vmatpush1.xpose.msra.mxu0 0.0
    %505 = vmatprep.mubr.f32.mxu0 0.0
    %506 = vmatmul.mubr.f32.gmra.mrb[0].mxu0 %v425
    %v507 = vpop.f32.mrb[0].mxu0
    %v508 = vadd.f32 %v439, %v507
    %v509 = vpop.f32.mrb[0].mxu0
    %510 = vmatprep.mubr.f32.mxu0 0.0
    %511 = vmatmul.mubr.f32.gmra.mrb[0].mxu0 %v426
    %v512 = vpop.f32.mrb[0].mxu0
    %v513 = vadd.f32 %v439, %v512
    %v514 = vpop.f32.mrb[0].mxu0
    %515 = vmatprep.mubr.f32.mxu0 0.0
    %516 = vmatmul.mubr.f32.gmra.mrb[0].mxu0 %v427
    %v517 = vpop.f32.mrb[0].mxu0
    %v518 = vadd.f32 %v439, %v517
    %v519 = vpop.f32.mrb[0].mxu0
    %520 = vmatprep.mubr.f32.mxu0 0.0
    %521 = vmatmul.mubr.f32.gmra.mrb[0].mxu0 %v428
    %v522 = vpop.f32.mrb[0].mxu0
    %v523 = vadd.f32 %v439, %v522
    %v524 = vpop.f32.mrb[0].mxu0
    %525 = vmatprep.mubr.f32.mxu0 0.0
    %526 = vmatmul.mubr.f32.gmra.mrb[0].mxu0 %v429
    %v527 = vpop.f32.mrb[0].mxu0
    %v528 = vadd.f32 %v439, %v527
    %v529 = vpop.f32.mrb[0].mxu0
    %530 = vmatprep.mubr.f32.mxu0 0.0
    %531 = vmatmul.mubr.f32.gmra.mrb[0].mxu0 %v430
    %v532 = vpop.f32.mrb[0].mxu0
    %v533 = vadd.f32 %v439, %v532
    %v534 = vpop.f32.mrb[0].mxu0
    %535 = vmatprep.mubr.f32.mxu0 0.0
    %536 = vmatmul.mubr.f32.gmra.mrb[0].mxu0 %v431
    %v537 = vpop.f32.mrb[0].mxu0
    %v538 = vadd.f32 %v439, %v537
    %v539 = vpop.f32.mrb[0].mxu0
    %540 = vmatprep.mubr.f32.mxu0 0.0
    %541 = vmatmul.mubr.f32.gmra.mrb[0].mxu0 %v432
    %v542 = vpop.f32.mrb[0].mxu0
    %v543 = vadd.f32 %v439, %v542
    %v544 = vpop.f32.mrb[0].mxu0
    %545 = vdwg.mxu0
    %vm546 = vcmask 64512
    %v547 = vsel %vm546, %v508, 0.0
    %v548 = vsel %vm546, %v513, 0.0
    %v549 = vadd.f32 %v547, %v548
    %v550 = vsel %vm546, %v518, 0.0
    %v551 = vadd.f32 %v549, %v550
    %v552 = vsel %vm546, %v523, 0.0
    %v553 = vadd.f32 %v551, %v552
    %v554 = vsel %vm546, %v528, 0.0
    %v555 = vadd.f32 %v553, %v554
    %v556 = vsel %vm546, %v533, 0.0
    %v557 = vadd.f32 %v555, %v556
    %v558 = vsel %vm546, %v538, 0.0
    %v559 = vadd.f32 %v557, %v558
    %v560 = vsel %vm546, %v543, 0.0
    %v561 = vadd.f32 %v559, %v560
    %v562 = vrot.slane %v561, 4
    %v563 = vadd.f32 %v561, %v562
    %v564 = vrot.slane %v563, 2
    %v565 = vadd.f32 %v563, %v564
    %v566 = vrot.slane %v565, 1
    %v567 = vadd.f32 %v565, %v566
    %v568 = vmul.f32 %v567, %v356
    %v569 = vmul.f32 %v508, %v508
    %v570 = vmul.f32 %v513, %v513
    %v571 = vmul.f32 %v518, %v518
    %v572 = vmul.f32 %v523, %v523
    %v573 = vmul.f32 %v528, %v528
    %v574 = vmul.f32 %v533, %v533
    %v575 = vmul.f32 %v538, %v538
    %v576 = vmul.f32 %v543, %v543
    %v577 = vsel %vm546, %v569, 0.0
    %v578 = vsel %vm546, %v570, 0.0
    %v579 = vadd.f32 %v577, %v578
    %v580 = vsel %vm546, %v571, 0.0
    %v581 = vadd.f32 %v579, %v580
    %v582 = vsel %vm546, %v572, 0.0
    %v583 = vadd.f32 %v581, %v582
    %v584 = vsel %vm546, %v573, 0.0
    %v585 = vadd.f32 %v583, %v584
    %v586 = vsel %vm546, %v574, 0.0
    %v587 = vadd.f32 %v585, %v586
    %v588 = vsel %vm546, %v575, 0.0
    %v589 = vadd.f32 %v587, %v588
    %v590 = vsel %vm546, %v576, 0.0
    %v591 = vadd.f32 %v589, %v590
    %v592 = vrot.slane %v591, 4
    %v593 = vadd.f32 %v591, %v592
    %v594 = vrot.slane %v593, 2
    %v595 = vadd.f32 %v593, %v594
    %v596 = vrot.slane %v595, 1
    %v597 = vadd.f32 %v595, %v596
    %v598 = vmul.f32 %v597, %v356
    %v599 = vmul.f32 %v568, %v568
    %v600 = vsub.f32 %v598, %v599
    %v601 = vld [vmem:[#allocation13] sm:$0x1]
    %v602 = vadd.f32 %v600, 1e-05
    %v603 = vrsqrt.pop %v602
    %v604 = vmul.f32 %v601, %v603
    %v605 = vld [vmem:[#allocation14] sm:$0x1]
    %v606 = vmul.f32 %v568, %v604
    %v607 = vsub.f32 %v605, %v606
    %v609 = vlaneseq
    %v610 = vshrl.u32 %v609, 7
    %v611 = vsub.s32 0, %v610
    %v612 = vrot.slane %v604, %v611
    %v614 = vmul.f32 %v508, %v612
    %v615 = vmul.f32 %v513, %v612
    %v616 = vmul.f32 %v518, %v612
    %v617 = vmul.f32 %v523, %v612
    %v618 = vmul.f32 %v528, %v612
    %v619 = vmul.f32 %v533, %v612
    %v620 = vmul.f32 %v538, %v612
    %v621 = vmul.f32 %v543, %v612
    %v623 = vlaneseq
    %v624 = vshrl.u32 %v623, 7
    %v625 = vsub.s32 0, %v624
    %v626 = vrot.slane %v607, %v625
    %v628 = vadd.f32 %v614, %v626
    %v629 = vadd.f32 %v615, %v626
    %v630 = vadd.f32 %v616, %v626
    %v631 = vadd.f32 %v617, %v626
    %v632 = vadd.f32 %v618, %v626
    %v633 = vadd.f32 %v619, %v626
    %v634 = vadd.f32 %v620, %v626
    %v635 = vadd.f32 %v621, %v626
    %v636 = vld [vmem:[%s16] sm:$0xff]
    %v637 = vld [vmem:[%s16 + $0x8] sm:$0xff]
    %v638 = vld [vmem:[%s16 + $0x10] sm:$0xff]
    %v639 = vld [vmem:[%s16 + $0x18] sm:$0xff]
    %v640 = vld [vmem:[%s16 + $0x20] sm:$0xff]
    %v641 = vld [vmem:[%s16 + $0x28] sm:$0xff]
    %v642 = vld [vmem:[%s16 + $0x30] sm:$0xff]
    %v643 = vld [vmem:[%s16 + $0x38] sm:$0xff]
    %v644 = vmul.f32 %v417, %v636
    %v645 = vmul.f32 %v418, %v637
    %v646 = vmul.f32 %v419, %v638
    %v647 = vmul.f32 %v420, %v639
    %v648 = vmul.f32 %v421, %v640
    %v649 = vmul.f32 %v422, %v641
    %v650 = vmul.f32 %v423, %v642
    %v651 = vmul.f32 %v424, %v643
    %v652 = vld [vmem:[%s17] sm:$0xff]
    %v653 = vld [vmem:[%s17 + $0x8] sm:$0xff]
    %v654 = vld [vmem:[%s17 + $0x10] sm:$0xff]
    %v655 = vld [vmem:[%s17 + $0x18] sm:$0xff]
    %v656 = vld [vmem:[%s17 + $0x20] sm:$0xff]
    %v657 = vld [vmem:[%s17 + $0x28] sm:$0xff]
    %v658 = vld [vmem:[%s17 + $0x30] sm:$0xff]
    %v659 = vld [vmem:[%s17 + $0x38] sm:$0xff]
    %v660 = vmul.f32 %v628, %v652
    %v661 = vmul.f32 %v629, %v653
    %v662 = vmul.f32 %v630, %v654
    %v663 = vmul.f32 %v631, %v655
    %v664 = vmul.f32 %v632, %v656
    %v665 = vmul.f32 %v633, %v657
    %v666 = vmul.f32 %v634, %v658
    %v667 = vmul.f32 %v635, %v659
    %vm668 = vcmp.gt.f32.partialorder %v644, 0.0
    %vm669 = vcmp.gt.f32.partialorder %v645, 0.0
    %vm670 = vcmp.gt.f32.partialorder %v646, 0.0
    %vm671 = vcmp.gt.f32.partialorder %v647, 0.0
    %vm672 = vcmp.gt.f32.partialorder %v648, 0.0
    %vm673 = vcmp.gt.f32.partialorder %v649, 0.0
    %vm674 = vcmp.gt.f32.partialorder %v650, 0.0
    %vm675 = vcmp.gt.f32.partialorder %v651, 0.0
    %v676 = vmul.f32 %v644, 1.442695
    %v677 = vpow.pop %v676
    %v678 = vmul.f32 %v645, 1.442695
    %v679 = vpow.pop %v678
    %v680 = vmul.f32 %v646, 1.442695
    %v681 = vpow.pop %v680
    %v682 = vmul.f32 %v647, 1.442695
    %v683 = vpow.pop %v682
    %v684 = vmul.f32 %v648, 1.442695
    %v685 = vpow.pop %v684
    %v686 = vmul.f32 %v649, 1.442695
    %v687 = vpow.pop %v686
    %v688 = vmul.f32 %v650, 1.442695
    %v689 = vpow.pop %v688
    %v690 = vmul.f32 %v651, 1.442695
    %v691 = vpow.pop %v690
    %v692 = vsub.f32 %v677, 1.0
    %v693 = vsub.f32 %v679, 1.0
    %v694 = vsub.f32 %v681, 1.0
    %v695 = vsub.f32 %v683, 1.0
    %v696 = vsub.f32 %v685, 1.0
    %v697 = vsub.f32 %v687, 1.0
    %v698 = vsub.f32 %v689, 1.0
    %v699 = vsub.f32 %v691, 1.0
    %v700 = vsel %vm668, %v644, %v692
    %v701 = vsel %vm669, %v645, %v693
    %v702 = vsel %vm670, %v646, %v694
    %v703 = vsel %vm671, %v647, %v695
    %v704 = vsel %vm672, %v648, %v696
    %v705 = vsel %vm673, %v649, %v697
    %v706 = vsel %vm674, %v650, %v698
    %v707 = vsel %vm675, %v651, %v699
    %vm708 = vcmp.gt.f32.partialorder %v660, 0.0
    %vm709 = vcmp.gt.f32.partialorder %v661, 0.0
    %vm710 = vcmp.gt.f32.partialorder %v662, 0.0
    %vm711 = vcmp.gt.f32.partialorder %v663, 0.0
    %vm712 = vcmp.gt.f32.partialorder %v664, 0.0
    %vm713 = vcmp.gt.f32.partialorder %v665, 0.0
    %vm714 = vcmp.gt.f32.partialorder %v666, 0.0
    %vm715 = vcmp.gt.f32.partialorder %v667, 0.0
    %v716 = vmul.f32 %v660, 1.442695
    %v717 = vpow.pop %v716
    %v718 = vmul.f32 %v661, 1.442695
    %v719 = vpow.pop %v718
    %v720 = vmul.f32 %v662, 1.442695
    %v721 = vpow.pop %v720
    %v722 = vmul.f32 %v663, 1.442695
    %v723 = vpow.pop %v722
    %v724 = vmul.f32 %v664, 1.442695
    %v725 = vpow.pop %v724
    %v726 = vmul.f32 %v665, 1.442695
    %v727 = vpow.pop %v726
    %v728 = vmul.f32 %v666, 1.442695
    %v729 = vpow.pop %v728
    %v730 = vmul.f32 %v667, 1.442695
    %v731 = vpow.pop %v730
    %v732 = vsub.f32 %v717, 1.0
    %v733 = vsub.f32 %v719, 1.0
    %v734 = vsub.f32 %v721, 1.0
    %v735 = vsub.f32 %v723, 1.0
    %v736 = vsub.f32 %v725, 1.0
    %v737 = vsub.f32 %v727, 1.0
    %v738 = vsub.f32 %v729, 1.0
    %v739 = vsub.f32 %v731, 1.0
    %v740 = vsel %vm708, %v660, %v732
    %v741 = vsel %vm709, %v661, %v733
    %v742 = vsel %vm710, %v662, %v734
    %v743 = vsel %vm711, %v663, %v735
    %v744 = vsel %vm712, %v664, %v736
    %v745 = vsel %vm713, %v665, %v737
    %v746 = vsel %vm714, %v666, %v738
    %v747 = vsel %vm715, %v667, %v739
    %v748 = vld [vmem:[%s10] sm:$0xff]
    %v749 = vld [vmem:[%s10 + $0x8] sm:$0xff]
    %v750 = vld [vmem:[%s10 + $0x10] sm:$0xff]
    %754 = vrot.lane.b32.xlu0 %v748, 112
    %v755 = vpop.permute.xlu0 %754
    %756 = vrot.lane.b32.xlu0 %v749, 112
    %v757 = vpop.permute.xlu0 %756
    %758 = vrot.lane.b32.xlu0 %v750, 112
    %v759 = vpop.permute.xlu0 %758
    %v761 = vsel %vm546, %v740, 0
    %v764 = vsel %vm546, %v741, 0
    %v767 = vsel %vm546, %v742, 0
    %v770 = vsel %vm546, %v743, 0
    %v773 = vsel %vm546, %v744, 0
    %v776 = vsel %vm546, %v745, 0
    %v779 = vsel %vm546, %v746, 0
    %v782 = vsel %vm546, %v747, 0
    %v784 = vsel %vm546, %v755, 0
    %v786 = vsel %vm546, %v757, 0
    %v788 = vsel %vm546, %v759, 0
    %790 = vmatprep.subr.mxu0 0.0
    %791 = vmatpush1.xpose.msra.mxu0 %v784
    %792 = vmatprep.subr.mxu0 0.0
    %793 = vmatpush1.xpose.msra.mxu0 %v786
    %794 = vmatprep.subr.mxu0 0.0
    %795 = vmatpush1.xpose.msra.mxu0 %v788
    %796 = vmatprep.subr.mxu0 0.0
    %797 = vmatpush1.xpose.msra.mxu0 0.0
    %798 = vmatprep.subr.mxu0 0.0
    %799 = vmatpush1.xpose.msra.mxu0 0.0
    %800 = vmatprep.subr.mxu0 0.0
    %801 = vmatpush1.xpose.msra.mxu0 0.0
    %802 = vmatprep.subr.mxu0 0.0
    %803 = vmatpush1.xpose.msra.mxu0 0.0
    %804 = vmatprep.subr.mxu0 0.0
    %805 = vmatpush1.xpose.msra.mxu0 0.0
    %806 = vmatprep.subr.mxu0 0.0
    %807 = vmatpush1.xpose.msra.mxu0 0.0
    %808 = vmatprep.subr.mxu0 0.0
    %809 = vmatpush1.xpose.msra.mxu0 0.0
    %810 = vmatprep.subr.mxu0 0.0
    %811 = vmatpush1.xpose.msra.mxu0 0.0
    %812 = vmatprep.subr.mxu0 0.0
    %813 = vmatpush1.xpose.msra.mxu0 0.0
    %814 = vmatprep.subr.mxu0 0.0
    %815 = vmatpush1.xpose.msra.mxu0 0.0
    %816 = vmatprep.subr.mxu0 0.0
    %817 = vmatpush1.xpose.msra.mxu0 0.0
    %818 = vmatprep.subr.mxu0 0.0
    %819 = vmatpush1.xpose.msra.mxu0 0.0
    %820 = vmatprep.subr.mxu0 0.0
    %821 = vmatpush1.xpose.msra.mxu0 0.0
    %822 = vmatprep.subr.mxu0 0.0
    %823 = vmatpush1.xpose.msra.mxu0 0.0
    %824 = vmatprep.subr.mxu0 0.0
    %825 = vmatpush1.xpose.msra.mxu0 0.0
    %826 = vmatprep.subr.mxu0 0.0
    %827 = vmatpush1.xpose.msra.mxu0 0.0
    %828 = vmatprep.subr.mxu0 0.0
    %829 = vmatpush1.xpose.msra.mxu0 0.0
    %830 = vmatprep.subr.mxu0 0.0
    %831 = vmatpush1.xpose.msra.mxu0 0.0
    %832 = vmatprep.subr.mxu0 0.0
    %833 = vmatpush1.xpose.msra.mxu0 0.0
    %834 = vmatprep.subr.mxu0 0.0
    %835 = vmatpush1.xpose.msra.mxu0 0.0
    %836 = vmatprep.subr.mxu0 0.0
    %837 = vmatpush1.xpose.msra.mxu0 0.0
    %838 = vmatprep.subr.mxu0 0.0
    %839 = vmatpush1.xpose.msra.mxu0 0.0
    %840 = vmatprep.subr.mxu0 0.0
    %841 = vmatpush1.xpose.msra.mxu0 0.0
    %842 = vmatprep.subr.mxu0 0.0
    %843 = vmatpush1.xpose.msra.mxu0 0.0
    %844 = vmatprep.subr.mxu0 0.0
    %845 = vmatpush1.xpose.msra.mxu0 0.0
    %846 = vmatprep.subr.mxu0 0.0
    %847 = vmatpush1.xpose.msra.mxu0 0.0
    %848 = vmatprep.subr.mxu0 0.0
    %849 = vmatpush1.xpose.msra.mxu0 0.0
    %850 = vmatprep.subr.mxu0 0.0
    %851 = vmatpush1.xpose.msra.mxu0 0.0
    %852 = vmatprep.subr.mxu0 0.0
    %853 = vmatpush1.xpose.msra.mxu0 0.0
    %854 = vmatprep.mubr.f32.mxu0 0.0
    %855 = vmatmul.mubr.f32.gmra.mrb[0].mxu0 %v761
    %v856 = vpop.f32.mrb[0].mxu0
    %v857 = vadd.f32 0.0, %v856
    %v858 = vpop.f32.mrb[0].mxu0
    %859 = vmatprep.mubr.f32.mxu0 0.0
    %860 = vmatmul.mubr.f32.gmra.mrb[0].mxu0 %v764
    %v861 = vpop.f32.mrb[0].mxu0
    %v862 = vadd.f32 0.0, %v861
    %v863 = vpop.f32.mrb[0].mxu0
    %864 = vmatprep.mubr.f32.mxu0 0.0
    %865 = vmatmul.mubr.f32.gmra.mrb[0].mxu0 %v767
    %v866 = vpop.f32.mrb[0].mxu0
    %v867 = vadd.f32 0.0, %v866
    %v868 = vpop.f32.mrb[0].mxu0
    %869 = vmatprep.mubr.f32.mxu0 0.0
    %870 = vmatmul.mubr.f32.gmra.mrb[0].mxu0 %v770
    %v871 = vpop.f32.mrb[0].mxu0
    %v872 = vadd.f32 0.0, %v871
    %v873 = vpop.f32.mrb[0].mxu0
    %874 = vmatprep.mubr.f32.mxu0 0.0
    %875 = vmatmul.mubr.f32.gmra.mrb[0].mxu0 %v773
    %v876 = vpop.f32.mrb[0].mxu0
    %v877 = vadd.f32 0.0, %v876
    %v878 = vpop.f32.mrb[0].mxu0
    %879 = vmatprep.mubr.f32.mxu0 0.0
    %880 = vmatmul.mubr.f32.gmra.mrb[0].mxu0 %v776
    %v881 = vpop.f32.mrb[0].mxu0
    %v882 = vadd.f32 0.0, %v881
    %v883 = vpop.f32.mrb[0].mxu0
    %884 = vmatprep.mubr.f32.mxu0 0.0
    %885 = vmatmul.mubr.f32.gmra.mrb[0].mxu0 %v779
    %v886 = vpop.f32.mrb[0].mxu0
    %v887 = vadd.f32 0.0, %v886
    %v888 = vpop.f32.mrb[0].mxu0
    %889 = vmatprep.mubr.f32.mxu0 0.0
    %890 = vmatmul.mubr.f32.gmra.mrb[0].mxu0 %v782
    %v891 = vpop.f32.mrb[0].mxu0
    %v892 = vadd.f32 0.0, %v891
    %v893 = vpop.f32.mrb[0].mxu0
    %894 = vdwg.mxu0
    %v896 = vsel %vm334, %v700, 0
    %v899 = vsel %vm334, %v701, 0
    %v902 = vsel %vm334, %v702, 0
    %v905 = vsel %vm334, %v703, 0
    %v908 = vsel %vm334, %v704, 0
    %v911 = vsel %vm334, %v705, 0
    %v914 = vsel %vm334, %v706, 0
    %v917 = vsel %vm334, %v707, 0
    %v919 = vsel %vm334, %v748, 0
    %v921 = vsel %vm334, %v749, 0
    %v923 = vsel %vm334, %v750, 0
    %925 = vmatprep.subr.mxu0 0.0
    %926 = vmatpush1.xpose.msra.mxu0 %v919
    %927 = vmatprep.subr.mxu0 0.0
    %928 = vmatpush1.xpose.msra.mxu0 %v921
    %929 = vmatprep.subr.mxu0 0.0
    %930 = vmatpush1.xpose.msra.mxu0 %v923
    %931 = vmatprep.subr.mxu0 0.0
    %932 = vmatpush1.xpose.msra.mxu0 0.0
    %933 = vmatprep.subr.mxu0 0.0
    %934 = vmatpush1.xpose.msra.mxu0 0.0
    %935 = vmatprep.subr.mxu0 0.0
    %936 = vmatpush1.xpose.msra.mxu0 0.0
    %937 = vmatprep.subr.mxu0 0.0
    %938 = vmatpush1.xpose.msra.mxu0 0.0
    %939 = vmatprep.subr.mxu0 0.0
    %940 = vmatpush1.xpose.msra.mxu0 0.0
    %941 = vmatprep.subr.mxu0 0.0
    %942 = vmatpush1.xpose.msra.mxu0 0.0
    %943 = vmatprep.subr.mxu0 0.0
    %944 = vmatpush1.xpose.msra.mxu0 0.0
    %945 = vmatprep.subr.mxu0 0.0
    %946 = vmatpush1.xpose.msra.mxu0 0.0
    %947 = vmatprep.subr.mxu0 0.0
    %948 = vmatpush1.xpose.msra.mxu0 0.0
    %949 = vmatprep.subr.mxu0 0.0
    %950 = vmatpush1.xpose.msra.mxu0 0.0
    %951 = vmatprep.subr.mxu0 0.0
    %952 = vmatpush1.xpose.msra.mxu0 0.0
    %953 = vmatprep.subr.mxu0 0.0
    %954 = vmatpush1.xpose.msra.mxu0 0.0
    %955 = vmatprep.subr.mxu0 0.0
    %956 = vmatpush1.xpose.msra.mxu0 0.0
    %957 = vmatprep.subr.mxu0 0.0
    %958 = vmatpush1.xpose.msra.mxu0 0.0
    %959 = vmatprep.subr.mxu0 0.0
    %960 = vmatpush1.xpose.msra.mxu0 0.0
    %961 = vmatprep.subr.mxu0 0.0
    %962 = vmatpush1.xpose.msra.mxu0 0.0
    %963 = vmatprep.subr.mxu0 0.0
    %964 = vmatpush1.xpose.msra.mxu0 0.0
    %965 = vmatprep.subr.mxu0 0.0
    %966 = vmatpush1.xpose.msra.mxu0 0.0
    %967 = vmatprep.subr.mxu0 0.0
    %968 = vmatpush1.xpose.msra.mxu0 0.0
    %969 = vmatprep.subr.mxu0 0.0
    %970 = vmatpush1.xpose.msra.mxu0 0.0
    %971 = vmatprep.subr.mxu0 0.0
    %972 = vmatpush1.xpose.msra.mxu0 0.0
    %973 = vmatprep.subr.mxu0 0.0
    %974 = vmatpush1.xpose.msra.mxu0 0.0
    %975 = vmatprep.subr.mxu0 0.0
    %976 = vmatpush1.xpose.msra.mxu0 0.0
    %977 = vmatprep.subr.mxu0 0.0
    %978 = vmatpush1.xpose.msra.mxu0 0.0
    %979 = vmatprep.subr.mxu0 0.0
    %980 = vmatpush1.xpose.msra.mxu0 0.0
    %981 = vmatprep.subr.mxu0 0.0
    %982 = vmatpush1.xpose.msra.mxu0 0.0
    %983 = vmatprep.subr.mxu0 0.0
    %984 = vmatpush1.xpose.msra.mxu0 0.0
    %985 = vmatprep.subr.mxu0 0.0
    %986 = vmatpush1.xpose.msra.mxu0 0.0
    %987 = vmatprep.subr.mxu0 0.0
    %988 = vmatpush1.xpose.msra.mxu0 0.0
    %989 = vmatprep.mubr.f32.mxu0 0.0
    %990 = vmatmul.mubr.f32.gmra.mrb[0].mxu0 %v896
    %v991 = vpop.f32.mrb[0].mxu0
    %v992 = vadd.f32 %v857, %v991
    %v993 = vpop.f32.mrb[0].mxu0
    %994 = vmatprep.mubr.f32.mxu0 0.0
    %995 = vmatmul.mubr.f32.gmra.mrb[0].mxu0 %v899
    %v996 = vpop.f32.mrb[0].mxu0
    %v997 = vadd.f32 %v862, %v996
    %v998 = vpop.f32.mrb[0].mxu0
    %999 = vmatprep.mubr.f32.mxu0 0.0
    %1000 = vmatmul.mubr.f32.gmra.mrb[0].mxu0 %v902
    %v1001 = vpop.f32.mrb[0].mxu0
    %v1002 = vadd.f32 %v867, %v1001
    %v1003 = vpop.f32.mrb[0].mxu0
    %1004 = vmatprep.mubr.f32.mxu0 0.0
    %1005 = vmatmul.mubr.f32.gmra.mrb[0].mxu0 %v905
    %v1006 = vpop.f32.mrb[0].mxu0
    %v1007 = vadd.f32 %v872, %v1006
    %v1008 = vpop.f32.mrb[0].mxu0
    %1009 = vmatprep.mubr.f32.mxu0 0.0
    %1010 = vmatmul.mubr.f32.gmra.mrb[0].mxu0 %v908
    %v1011 = vpop.f32.mrb[0].mxu0
    %v1012 = vadd.f32 %v877, %v1011
    %v1013 = vpop.f32.mrb[0].mxu0
    %1014 = vmatprep.mubr.f32.mxu0 0.0
    %1015 = vmatmul.mubr.f32.gmra.mrb[0].mxu0 %v911
    %v1016 = vpop.f32.mrb[0].mxu0
    %v1017 = vadd.f32 %v882, %v1016
    %v1018 = vpop.f32.mrb[0].mxu0
    %1019 = vmatprep.mubr.f32.mxu0 0.0
    %1020 = vmatmul.mubr.f32.gmra.mrb[0].mxu0 %v914
    %v1021 = vpop.f32.mrb[0].mxu0
    %v1022 = vadd.f32 %v887, %v1021
    %v1023 = vpop.f32.mrb[0].mxu0
    %1024 = vmatprep.mubr.f32.mxu0 0.0
    %1025 = vmatmul.mubr.f32.gmra.mrb[0].mxu0 %v917
    %v1026 = vpop.f32.mrb[0].mxu0
    %v1027 = vadd.f32 %v892, %v1026
    %v1028 = vpop.f32.mrb[0].mxu0
    %1029 = vdwg.mxu0
    %v1030 = vld [vmem:[#allocation16] sm:$0x1]
    %v1032 = vlaneseq
    %v1033 = vshrl.u32 %v1032, 7
    %v1034 = vsub.s32 0, %v1033
    %v1035 = vrot.slane %v1030, %v1034
    %v1037 = vadd.f32 %v992, %v1035
    %v1038 = vadd.f32 %v997, %v1035
    %v1039 = vadd.f32 %v1002, %v1035
    %v1040 = vadd.f32 %v1007, %v1035
    %v1041 = vadd.f32 %v1012, %v1035
    %v1042 = vadd.f32 %v1017, %v1035
    %v1043 = vadd.f32 %v1022, %v1035
    %v1044 = vadd.f32 %v1027, %v1035
    %vm1045 = vcmask 195584
    %v1046 = vsel %vm1045, %v1037, 0.0
    %v1047 = vsel %vm1045, %v1038, 0.0
    %v1048 = vadd.f32 %v1046, %v1047
    %v1049 = vsel %vm1045, %v1039, 0.0
    %v1050 = vadd.f32 %v1048, %v1049
    %v1051 = vsel %vm1045, %v1040, 0.0
    %v1052 = vadd.f32 %v1050, %v1051
    %v1053 = vsel %vm1045, %v1041, 0.0
    %v1054 = vadd.f32 %v1052, %v1053
    %v1055 = vsel %vm1045, %v1042, 0.0
    %v1056 = vadd.f32 %v1054, %v1055
    %v1057 = vsel %vm1045, %v1043, 0.0
    %v1058 = vadd.f32 %v1056, %v1057
    %v1059 = vsel %vm1045, %v1044, 0.0
    %v1060 = vadd.f32 %v1058, %v1059
    %v1061 = vrot.slane %v1060, 4
    %v1062 = vadd.f32 %v1060, %v1061
    %v1063 = vrot.slane %v1062, 2
    %v1064 = vadd.f32 %v1062, %v1063
    %v1065 = vrot.slane %v1064, 1
    %v1066 = vadd.f32 %v1064, %v1065
    %v1067 = vmul.f32 %v1066, %v356
    %v1068 = vmul.f32 %v1037, %v1037
    %v1069 = vmul.f32 %v1038, %v1038
    %v1070 = vmul.f32 %v1039, %v1039
    %v1071 = vmul.f32 %v1040, %v1040
    %v1072 = vmul.f32 %v1041, %v1041
    %v1073 = vmul.f32 %v1042, %v1042
    %v1074 = vmul.f32 %v1043, %v1043
    %v1075 = vmul.f32 %v1044, %v1044
    %v1076 = vsel %vm1045, %v1068, 0.0
    %v1077 = vsel %vm1045, %v1069, 0.0
    %v1078 = vadd.f32 %v1076, %v1077
    %v1079 = vsel %vm1045, %v1070, 0.0
    %v1080 = vadd.f32 %v1078, %v1079
    %v1081 = vsel %vm1045, %v1071, 0.0
    %v1082 = vadd.f32 %v1080, %v1081
    %v1083 = vsel %vm1045, %v1072, 0.0
    %v1084 = vadd.f32 %v1082, %v1083
    %v1085 = vsel %vm1045, %v1073, 0.0
    %v1086 = vadd.f32 %v1084, %v1085
    %v1087 = vsel %vm1045, %v1074, 0.0
    %v1088 = vadd.f32 %v1086, %v1087
    %v1089 = vsel %vm1045, %v1075, 0.0
    %v1090 = vadd.f32 %v1088, %v1089
    %v1091 = vrot.slane %v1090, 4
    %v1092 = vadd.f32 %v1090, %v1091
    %v1093 = vrot.slane %v1092, 2
    %v1094 = vadd.f32 %v1092, %v1093
    %v1095 = vrot.slane %v1094, 1
    %v1096 = vadd.f32 %v1094, %v1095
    %v1097 = vmul.f32 %v1096, %v356
    %v1098 = vmul.f32 %v1067, %v1067
    %v1099 = vsub.f32 %v1097, %v1098
    %v1100 = vld [vmem:[#allocation17] sm:$0x1]
    %v1101 = vadd.f32 %v1099, 1e-05
    %v1102 = vrsqrt.pop %v1101
    %v1103 = vmul.f32 %v1100, %v1102
    %v1104 = vld [vmem:[#allocation19] sm:$0x1]
    %v1105 = vmul.f32 %v1067, %v1103
    %v1106 = vsub.f32 %v1104, %v1105
    %v1108 = vlaneseq
    %v1109 = vshrl.u32 %v1108, 7
    %v1110 = vsub.s32 0, %v1109
    %v1111 = vrot.slane %v1103, %v1110
    %v1113 = vmul.f32 %v1037, %v1111
    %v1114 = vmul.f32 %v1038, %v1111
    %v1115 = vmul.f32 %v1039, %v1111
    %v1116 = vmul.f32 %v1040, %v1111
    %v1117 = vmul.f32 %v1041, %v1111
    %v1118 = vmul.f32 %v1042, %v1111
    %v1119 = vmul.f32 %v1043, %v1111
    %v1120 = vmul.f32 %v1044, %v1111
    %v1122 = vlaneseq
    %v1123 = vshrl.u32 %v1122, 7
    %v1124 = vsub.s32 0, %v1123
    %v1125 = vrot.slane %v1106, %v1124
    %v1127 = vadd.f32 %v1113, %v1125
    %v1128 = vadd.f32 %v1114, %v1125
    %v1129 = vadd.f32 %v1115, %v1125
    %v1130 = vadd.f32 %v1116, %v1125
    %v1131 = vadd.f32 %v1117, %v1125
    %v1132 = vadd.f32 %v1118, %v1125
    %v1133 = vadd.f32 %v1119, %v1125
    %v1134 = vadd.f32 %v1120, %v1125
    %vm1135 = vcmp.gt.f32.partialorder %v1127, 0.0
    %vm1136 = vcmp.gt.f32.partialorder %v1128, 0.0
    %vm1137 = vcmp.gt.f32.partialorder %v1129, 0.0
    %vm1138 = vcmp.gt.f32.partialorder %v1130, 0.0
    %vm1139 = vcmp.gt.f32.partialorder %v1131, 0.0
    %vm1140 = vcmp.gt.f32.partialorder %v1132, 0.0
    %vm1141 = vcmp.gt.f32.partialorder %v1133, 0.0
    %vm1142 = vcmp.gt.f32.partialorder %v1134, 0.0
    %v1143 = vmul.f32 %v1127, 1.442695
    %v1144 = vpow.pop %v1143
    %v1145 = vmul.f32 %v1128, 1.442695
    %v1146 = vpow.pop %v1145
    %v1147 = vmul.f32 %v1129, 1.442695
    %v1148 = vpow.pop %v1147
    %v1149 = vmul.f32 %v1130, 1.442695
    %v1150 = vpow.pop %v1149
    %v1151 = vmul.f32 %v1131, 1.442695
    %v1152 = vpow.pop %v1151
    %v1153 = vmul.f32 %v1132, 1.442695
    %v1154 = vpow.pop %v1153
    %v1155 = vmul.f32 %v1133, 1.442695
    %v1156 = vpow.pop %v1155
    %v1157 = vmul.f32 %v1134, 1.442695
    %v1158 = vpow.pop %v1157
    %v1159 = vsub.f32 %v1144, 1.0
    %v1160 = vsub.f32 %v1146, 1.0
    %v1161 = vsub.f32 %v1148, 1.0
    %v1162 = vsub.f32 %v1150, 1.0
    %v1163 = vsub.f32 %v1152, 1.0
    %v1164 = vsub.f32 %v1154, 1.0
    %v1165 = vsub.f32 %v1156, 1.0
    %v1166 = vsub.f32 %v1158, 1.0
    %v1167 = vsel %vm1135, %v1127, %v1159
    %v1168 = vsel %vm1136, %v1128, %v1160
    %v1169 = vsel %vm1137, %v1129, %v1161
    %v1170 = vsel %vm1138, %v1130, %v1162
    %v1171 = vsel %vm1139, %v1131, %v1163
    %v1172 = vsel %vm1140, %v1132, %v1164
    %v1173 = vsel %vm1141, %v1133, %v1165
    %v1174 = vsel %vm1142, %v1134, %v1166
    %v1175 = vld [vmem:[#allocation20] sm:$0x1]
    %v1177 = vlaneseq
    %v1178 = vshrl.u32 %v1177, 7
    %v1179 = vsub.s32 0, %v1178
    %v1180 = vrot.slane %v1175, %v1179
    %v1182 = vmul.f32 %v1167, %v1180
    %v1183 = vmul.f32 %v1168, %v1180
    %v1184 = vmul.f32 %v1169, %v1180
    %v1185 = vmul.f32 %v1170, %v1180
    %v1186 = vmul.f32 %v1171, %v1180
    %v1187 = vmul.f32 %v1172, %v1180
    %v1188 = vmul.f32 %v1173, %v1180
    %v1189 = vmul.f32 %v1174, %v1180
    %v1190 = vsel %vm1045, %v1182, 0.0
    %1191 = vadd.xlane.f32.xlu0 %v1190
    %v1192 = vpop.xlane.xlu0 %1191
    %v1193 = vsel %vm1045, %v1183, 0.0
    %1194 = vadd.xlane.f32.xlu0 %v1193
    %v1195 = vpop.xlane.xlu0 %1194
    %v1196 = vsel %vm1045, %v1184, 0.0
    %1197 = vadd.xlane.f32.xlu0 %v1196
    %v1198 = vpop.xlane.xlu0 %1197
    %v1199 = vsel %vm1045, %v1185, 0.0
    %1200 = vadd.xlane.f32.xlu0 %v1199
    %v1201 = vpop.xlane.xlu0 %1200
    %v1202 = vsel %vm1045, %v1186, 0.0
    %1203 = vadd.xlane.f32.xlu0 %v1202
    %v1204 = vpop.xlane.xlu0 %1203
    %v1205 = vsel %vm1045, %v1187, 0.0
    %1206 = vadd.xlane.f32.xlu0 %v1205
    %v1207 = vpop.xlane.xlu0 %1206
    %v1208 = vsel %vm1045, %v1188, 0.0
    %1209 = vadd.xlane.f32.xlu0 %v1208
    %v1210 = vpop.xlane.xlu0 %1209
    %v1211 = vsel %vm1045, %v1189, 0.0
    %1212 = vadd.xlane.f32.xlu0 %v1211
    %v1213 = vpop.xlane.xlu0 %1212
    %v1214 = vld [vmem:[#allocation2] sm:$0x1]
    %v1216 = vlaneseq
    %v1217 = vshrl.u32 %v1216, 7
    %v1218 = vsub.s32 0, %v1217
    %v1219 = vrot.slane %v1214, %v1218
    %v1221 = vadd.f32 %v1192, %v1219
    %v1222 = vadd.f32 %v1195, %v1219
    %v1223 = vadd.f32 %v1198, %v1219
    %v1224 = vadd.f32 %v1201, %v1219
    %v1225 = vadd.f32 %v1204, %v1219
    %v1226 = vadd.f32 %v1207, %v1219
    %v1227 = vadd.f32 %v1210, %v1219
    %v1228 = vadd.f32 %v1213, %v1219
    %vm1229 = vcmask 7168
    %1230 = vst.msk [vmem:[%s18] sm:$0xff] %vm1229, %v1221
    %1231 = vst.msk [vmem:[%s18 + $0x8] sm:$0xff] %vm1229, %v1222
    %1232 = vst.msk [vmem:[%s18 + $0x10] sm:$0xff] %vm1229, %v1223
    %1233 = vst.msk [vmem:[%s18 + $0x18] sm:$0xff] %vm1229, %v1224
    %1234 = vst.msk [vmem:[%s18 + $0x20] sm:$0xff] %vm1229, %v1225
    %1235 = vst.msk [vmem:[%s18 + $0x28] sm:$0xff] %vm1229, %v1226
    %1236 = vst.msk [vmem:[%s18 + $0x30] sm:$0xff] %vm1229, %v1227
    %1237 = vst.msk [vmem:[%s18 + $0x38] sm:$0xff] %vm1229, %v1228
    // Predicated region
    $region122: #{tpu_custom_call.1} parent=1 // pred_check
      _
    $region123: #{tpu_custom_call.1} parent=1 // pred_check_branch
      %1239 = sbr.rel (0) target = $region125
    $region124: #{tpu_custom_call.1} parent=1 // pred_region
      _
    $region125: #{tpu_custom_call.1} parent=1 // pred_fallthru
      _
    // Predicated region
    $region126: #{tpu_custom_call.1} parent=1 // pred_check
      _
    $region127: #{tpu_custom_call.1} parent=1 // pred_check_branch
      %1241 = sbr.rel (0) target = $region129
    $region128: #{tpu_custom_call.1} parent=1 // pred_region
      _
    $region129: #{tpu_custom_call.1} parent=1 // pred_fallthru
      _
    %1242 = vsyncpa [#allocation4], 1
    %1243 = vsyncpa [#allocation6], 1
    %1244 = vsyncpa [#allocation9], 1
    %1245 = vsyncpa [#allocation12], 1
    %1246 = vsyncpa [#allocation15], 1
    %1247 = vsyncpa [#allocation18], 1
    %1248 = vsyncpa [#allocation21], 1

</llo_original>
